<compile_context>
chip_gen: v7x
topology: tpu7x:2x2x1
jax: 0.10.0
libtpu: 0.0.40
codegen_flags: <defaults>
</compile_context>

<pallas_src>
import functools

import jax
import jax.numpy as jnp
from jax.experimental import pallas as pl
from jax.experimental.pallas import tpu as pltpu

# ----------------------------- config (smoke-test sized) ----------------------
BATCH = 2
SEQ = 8
HIDDEN = 32
NUM_HEADS = 4
HEAD_DIM = HIDDEN // NUM_HEADS
INTERMEDIATE = 4 * HIDDEN
NUM_LAYERS = 2
LN_EPS = 1e-12


# ----------------------------- in-kernel helpers ------------------------------
def _layernorm(x, gamma, beta, eps=LN_EPS):
    mu = jnp.mean(x, axis=-1, keepdims=True)
    var = jnp.mean((x - mu) * (x - mu), axis=-1, keepdims=True)
    return (x - mu) * jax.lax.rsqrt(var + eps) * gamma + beta


def _gelu(x):
    # TODO(synk): BERT uses exact erf-based GELU; tanh approximation differs ~1e-3.
    c = 0.7978845608028654  # sqrt(2/pi)
    return 0.5 * x * (1.0 + jnp.tanh(c * (x + 0.044715 * x * x * x)))


# ------------------------------ fused encoder kernel --------------------------
def bert_encoder_kernel(
    x_ref,
    wqkv_ref, bqkv_ref, wo_ref, bo_ref, ln1_g_ref, ln1_b_ref,
    w1_ref, b1_ref, w2_ref, b2_ref, ln2_g_ref, ln2_b_ref,
    o_ref,
    *, n_heads: int,
):
    layer = pl.program_id(1)

    # Layer 0: seed the VMEM-resident hidden-state carry. The output block is
    # revisited across the layer axis, so it never round-trips HBM mid-stack.
    @pl.when(layer == 0)
    def _():
        o_ref[...] = x_ref[...]

    f32, bf16 = jnp.float32, jnp.bfloat16
    S, H = o_ref.shape
    dh = H // n_heads

    h = o_ref[...].astype(f32)                                        # (S, H)

    # ---- fused QKV projection: one MXU pass, bf16 operands, f32 accumulate ----
    qkv = jnp.dot(h.astype(bf16), wqkv_ref[...],
                  preferred_element_type=f32) + bqkv_ref[...]          # (S, 3H)

    # split heads: (S, H) -> (n_heads, S, dh). 1/sqrt(dh) is folded into Wq.
    q = pltpu.einshape("shd->hsd", qkv[:, :H].reshape(S, n_heads, dh)).astype(bf16)
    k = pltpu.einshape("shd->hsd", qkv[:, H:2 * H].reshape(S, n_heads, dh)).astype(bf16)
    v = pltpu.einshape("shd->hsd", qkv[:, 2 * H:].reshape(S, n_heads, dh)).astype(bf16)

    # ---- head-batched attention (single contraction per stage, no head loop) ----
    s = jnp.einsum("hqd,hkd->hqk", q, k, preferred_element_type=f32)   # (nh, S, S)
    s = s - jnp.max(s, axis=-1, keepdims=True)
    p = jnp.exp(s)
    p = p * pl.reciprocal(jnp.sum(p, axis=-1, keepdims=True), approx=True)
    ctx = jnp.einsum("hqk,hkd->hqd", p.astype(bf16), v,
                     preferred_element_type=f32)                       # (nh, S, dh)

    # Output projection as head-batched matmul + sum over heads
    # (Wo pre-reshaped to (nh, dh, H)); avoids a head-merge relayout of ctx.
    attn = jnp.einsum("hqd,hdo->hqo", ctx.astype(bf16), wo_ref[...],
                      preferred_element_type=f32)                      # (nh, S, H)
    attn = jnp.sum(attn, axis=0) + bo_ref[...]                         # (S, H)

    h1 = _layernorm(h + attn, ln1_g_ref[...], ln1_b_ref[...])

    # ---- feed-forward (GELU) + residual + LayerNorm ----
    ff = jnp.dot(h1.astype(bf16), w1_ref[...],
                 preferred_element_type=f32) + b1_ref[...]             # (S, I)
    ff = _gelu(ff)
    ffo = jnp.dot(ff.astype(bf16), w2_ref[...],
                  preferred_element_type=f32) + b2_ref[...]            # (S, H)
    h2 = _layernorm(h1 + ffo, ln2_g_ref[...], ln2_b_ref[...])

    # Carry to next layer; flushed to HBM only when the batch block changes.
    o_ref[...] = h2.astype(o_ref.dtype)


# ------------------------------ wrapper ---------------------------------------
def bert_encoder(embeddings, packed_params):
    """BertEncoder.forward: the whole layer stack as a single pallas_call."""
    B, S, H = embeddings.shape
    L = packed_params[0].shape[0]

    act_spec = pl.BlockSpec((None, S, H), lambda b, l: (b, 0, 0))

    def weight_spec(p):
        ndim = p.ndim
        # Block = one layer's slab; weights stay VMEM-resident (double-buffered)
        # while the layer axis advances.
        return pl.BlockSpec((None,) + tuple(p.shape[1:]),
                            lambda b, l: (l,) + (0,) * (ndim - 1))

    weight_specs = [weight_spec(p) for p in packed_params]

    return pl.pallas_call(
        functools.partial(bert_encoder_kernel, n_heads=NUM_HEADS),
        out_shape=jax.ShapeDtypeStruct((B, S, H), embeddings.dtype),
        grid=(B, L),
        in_specs=[act_spec] + weight_specs,
        out_specs=pl.BlockSpec((None, S, H), lambda b, l: (b, 0, 0)),
        compiler_params=pltpu.CompilerParams(
            dimension_semantics=("parallel", "arbitrary"),
            vmem_limit_bytes=32 * 1024 * 1024,
        ),
    )(embeddings, *packed_params)


# ------------------------------ parameter init / packing ----------------------
def init_layer_params(key, hidden, intermediate):
    keys = jax.random.split(key, 6)
    std = 0.02
    f32 = jnp.float32

    def dense(k, din, dout):
        return jax.random.normal(k, (din, dout), f32) * std, jnp.zeros((1, dout), f32)

    wq, bq = dense(keys[0], hidden, hidden)
    wk, bk = dense(keys[1], hidden, hidden)
    wv, bv = dense(keys[2], hidden, hidden)
    wo, bo = dense(keys[3], hidden, hidden)
    ln1_g = jnp.ones((1, hidden), f32)
    ln1_b = jnp.zeros((1, hidden), f32)
    w1, b1 = dense(keys[4], hidden, intermediate)
    w2, b2 = dense(keys[5], intermediate, hidden)
    ln2_g = jnp.ones((1, hidden), f32)
    ln2_b = jnp.zeros((1, hidden), f32)
    return (wq, bq, wk, bk, wv, bv, wo, bo, ln1_g, ln1_b,
            w1, b1, w2, b2, ln2_g, ln2_b)


def pack_encoder_params(per_layer, hidden, n_heads):
    """Fuse QKV, fold the attention scale into Wq, reshape Wo head-major,
    cast matmul weights to bf16, and stack everything with a leading layer axis."""
    dh = hidden // n_heads
    scale = 1.0 / (dh ** 0.5)
    bf16 = jnp.bfloat16
    packed = []
    for (wq, bq, wk, bk, wv, bv, wo, bo, ln1_g, ln1_b,
         w1, b1, w2, b2, ln2_g, ln2_b) in per_layer:
        wqkv = jnp.concatenate([wq * scale, wk, wv], axis=1).astype(bf16)   # (H, 3H)
        bqkv = jnp.concatenate([bq * scale, bk, bv], axis=1)                # (1, 3H) f32
        wo3 = wo.reshape(n_heads, dh, hidden).astype(bf16)                  # (nh, dh, H)
        packed.append((wqkv, bqkv, wo3, bo, ln1_g, ln1_b,
                       w1.astype(bf16), b1, w2.astype(bf16), b2, ln2_g, ln2_b))
    return tuple(jnp.stack(arrs) for arrs in zip(*packed))


# ------------------------------ main -------------------------------------------
if __name__ == "__main__":
    root_key = jax.random.PRNGKey(0)
    emb_key, *layer_keys = jax.random.split(root_key, 1 + NUM_LAYERS)

    embeddings = jax.random.normal(emb_key, (BATCH, SEQ, HIDDEN), jnp.float32)
    per_layer = [init_layer_params(k, HIDDEN, INTERMEDIATE) for k in layer_keys]
    packed = pack_encoder_params(per_layer, HIDDEN, NUM_HEADS)

    out = bert_encoder(embeddings, packed)
    out = jax.block_until_ready(out)

    assert out.shape == (BATCH, SEQ, HIDDEN)
    assert out.dtype == jnp.float32
    assert bool(jnp.all(jnp.isfinite(out)))
    print("KERNEL_OK")
</pallas_src>

<mosaic_0001>
module attributes {stable_mosaic.version = 11 : i64} {
  func.func @bert_encoder_kernel(%arg0: i32, %arg1: i32, %arg2: memref<1x8x32xf32, #tpu.memory_space<vmem>>, %arg3: memref<1x32x96xbf16, #tpu.memory_space<vmem>>, %arg4: memref<1x1x96xf32, #tpu.memory_space<vmem>>, %arg5: memref<1x4x8x32xbf16, #tpu.memory_space<vmem>>, %arg6: memref<1x1x32xf32, #tpu.memory_space<vmem>>, %arg7: memref<1x1x32xf32, #tpu.memory_space<vmem>>, %arg8: memref<1x1x32xf32, #tpu.memory_space<vmem>>, %arg9: memref<1x32x128xbf16, #tpu.memory_space<vmem>>, %arg10: memref<1x1x128xf32, #tpu.memory_space<vmem>>, %arg11: memref<1x128x32xbf16, #tpu.memory_space<vmem>>, %arg12: memref<1x1x32xf32, #tpu.memory_space<vmem>>, %arg13: memref<1x1x32xf32, #tpu.memory_space<vmem>>, %arg14: memref<1x1x32xf32, #tpu.memory_space<vmem>>, %arg15: memref<1x8x32xf32, #tpu.memory_space<vmem>>) attributes {dimension_semantics = [#tpu.dimension_semantics<parallel>, #tpu.dimension_semantics<arbitrary>], iteration_bounds = array<i64: 2, 2>, scalar_prefetch = 0 : i64, scratch_operands = 0 : i64, tpu.core_type = #tpu.core_type<tc>, window_params = [{transform_indices = @transform_0, window_bounds = array<i64: 1, 8, 32>}, {transform_indices = @transform_1, window_bounds = array<i64: 1, 32, 96>}, {transform_indices = @transform_2, window_bounds = array<i64: 1, 1, 96>}, {transform_indices = @transform_3, window_bounds = array<i64: 1, 4, 8, 32>}, {transform_indices = @transform_4, window_bounds = array<i64: 1, 1, 32>}, {transform_indices = @transform_5, window_bounds = array<i64: 1, 1, 32>}, {transform_indices = @transform_6, window_bounds = array<i64: 1, 1, 32>}, {transform_indices = @transform_7, window_bounds = array<i64: 1, 32, 128>}, {transform_indices = @transform_8, window_bounds = array<i64: 1, 1, 128>}, {transform_indices = @transform_9, window_bounds = array<i64: 1, 128, 32>}, {transform_indices = @transform_10, window_bounds = array<i64: 1, 1, 32>}, {transform_indices = @transform_11, window_bounds = array<i64: 1, 1, 32>}, {transform_indices = @transform_12, window_bounds = array<i64: 1, 1, 32>}, {transform_indices = @transform_13, window_bounds = array<i64: 1, 8, 32>}]} {
    %c0_i32 = arith.constant 0 : i32
    %0 = arith.cmpi eq, %arg1, %c0_i32 : i32
    %1 = arith.extui %0 : i1 to i32
    %c0_i32_0 = arith.constant 0 : i32
    %2 = arith.cmpi ne, %1, %c0_i32_0 : i32
    scf.if %2 {
      %c0_65 = arith.constant 0 : index
      %c0_66 = arith.constant 0 : index
      %c0_67 = arith.constant 0 : index
      %137 = vector.load %arg2[%c0_65, %c0_66, %c0_67] : memref<1x8x32xf32, #tpu.memory_space<vmem>>, vector<1x8x32xf32>
      %138 = vector.shape_cast %137 : vector<1x8x32xf32> to vector<8x32xf32>
      %c0_68 = arith.constant 0 : index
      %c0_69 = arith.constant 0 : index
      %c0_70 = arith.constant 0 : index
      %139 = vector.load %arg15[%c0_68, %c0_69, %c0_70] : memref<1x8x32xf32, #tpu.memory_space<vmem>>, vector<1x8x32xf32>
      %140 = vector.shape_cast %139 : vector<1x8x32xf32> to vector<8x32xf32>
      %141 = vector.shape_cast %138 : vector<8x32xf32> to vector<1x8x32xf32>
      tpu.vector_store %arg15[%c0_68, %c0_69, %c0_70], %141 {strides = array<i32>} : memref<1x8x32xf32, #tpu.memory_space<vmem>>, vector<1x8x32xf32>,
    } else {
    }
    %c0 = arith.constant 0 : index
    %c0_1 = arith.constant 0 : index
    %c0_2 = arith.constant 0 : index
    %3 = vector.load %arg15[%c0, %c0_1, %c0_2] : memref<1x8x32xf32, #tpu.memory_space<vmem>>, vector<1x8x32xf32>
    %4 = vector.shape_cast %3 : vector<1x8x32xf32> to vector<8x32xf32>
    %5 = arith.truncf %4 : vector<8x32xf32> to vector<8x32xbf16>
    %c0_3 = arith.constant 0 : index
    %c0_4 = arith.constant 0 : index
    %c0_5 = arith.constant 0 : index
    %6 = vector.load %arg3[%c0_3, %c0_4, %c0_5] : memref<1x32x96xbf16, #tpu.memory_space<vmem>>, vector<1x32x96xbf16>
    %7 = vector.shape_cast %6 : vector<1x32x96xbf16> to vector<32x96xbf16>
    %cst = arith.constant dense<0.000000e+00> : vector<8x96xf32>
    %8 = tpu.matmul %5, %7, %cst {dimension_numbers = #tpu.dot_dimension_numbers<[1], [0], [0], [1], [0, 0, 1, 1], [], []>} : vector<8x32xbf16>, vector<32x96xbf16>, vector<8x96xf32> -> vector<8x96xf32>
    %c0_6 = arith.constant 0 : index
    %c0_7 = arith.constant 0 : index
    %c0_8 = arith.constant 0 : index
    %9 = vector.load %arg4[%c0_6, %c0_7, %c0_8] : memref<1x1x96xf32, #tpu.memory_space<vmem>>, vector<1x1x96xf32>
    %10 = vector.shape_cast %9 : vector<1x1x96xf32> to vector<1x96xf32>
    %11 = vector.broadcast %10 : vector<1x96xf32> to vector<8x96xf32>
    %12 = arith.addf %8, %11 : vector<8x96xf32>
    %13 = vector.extract_strided_slice %12 {offsets = [0, 0], sizes = [8, 32], strides = [1, 1]} : vector<8x96xf32> to vector<8x32xf32>
    %14 = vector.shape_cast %13 : vector<8x32xf32> to vector<8x4x8xf32>
    %15 = tpu.transpose %14, [1, 0, 2] : vector<8x4x8xf32> -> vector<4x8x8xf32>
    %16 = arith.truncf %15 : vector<4x8x8xf32> to vector<4x8x8xbf16>
    %17 = vector.extract_strided_slice %12 {offsets = [0, 32], sizes = [8, 32], strides = [1, 1]} : vector<8x96xf32> to vector<8x32xf32>
    %18 = vector.shape_cast %17 : vector<8x32xf32> to vector<8x4x8xf32>
    %19 = tpu.transpose %18, [1, 0, 2] : vector<8x4x8xf32> -> vector<4x8x8xf32>
    %20 = arith.truncf %19 : vector<4x8x8xf32> to vector<4x8x8xbf16>
    %21 = vector.extract_strided_slice %12 {offsets = [0, 64], sizes = [8, 32], strides = [1, 1]} : vector<8x96xf32> to vector<8x32xf32>
    %22 = vector.shape_cast %21 : vector<8x32xf32> to vector<8x4x8xf32>
    %23 = tpu.transpose %22, [1, 0, 2] : vector<8x4x8xf32> -> vector<4x8x8xf32>
    %24 = arith.truncf %23 : vector<4x8x8xf32> to vector<4x8x8xbf16>
    "tpu.trace_start"() <{level = 10 : i32, message = "hqd,hkd->hqk"}> : () -> ()
    %cst_9 = arith.constant dense<0.000000e+00> : vector<4x8x8xf32>
    %25 = tpu.matmul %16, %20, %cst_9 {dimension_numbers = #tpu.dot_dimension_numbers<[2], [2], [1], [1], [0, 0, 0, 1, 1, 1], [0], [0]>} : vector<4x8x8xbf16>, vector<4x8x8xbf16>, vector<4x8x8xf32> -> vector<4x8x8xf32>
    "tpu.trace_stop"() : () -> ()
    %cst_10 = arith.constant dense<0xFF800000> : vector<4x8xf32>
    %26 = vector.multi_reduction <maximumf>, %25, %cst_10 [2] : vector<4x8x8xf32> to vector<4x8xf32>
    %27 = vector.shape_cast %26 : vector<4x8xf32> to vector<4x8x1xf32>
    %28 = vector.broadcast %27 : vector<4x8x1xf32> to vector<4x8x8xf32>
    %29 = arith.subf %25, %28 : vector<4x8x8xf32>
    %30 = math.exp %29 : vector<4x8x8xf32>
    %cst_11 = arith.constant dense<0.000000e+00> : vector<4x8xf32>
    %31 = vector.multi_reduction <add>, %30, %cst_11 [2] : vector<4x8x8xf32> to vector<4x8xf32>
    %32 = vector.shape_cast %31 : vector<4x8xf32> to vector<4x8x1xf32>
    %33 = tpu.reciprocal %32 {approx = true} : vector<4x8x1xf32> -> vector<4x8x1xf32>
    %34 = vector.broadcast %33 : vector<4x8x1xf32> to vector<4x8x8xf32>
    %35 = arith.mulf %30, %34 : vector<4x8x8xf32>
    %36 = arith.truncf %35 : vector<4x8x8xf32> to vector<4x8x8xbf16>
    "tpu.trace_start"() <{level = 10 : i32, message = "hqk,hkd->hqd"}> : () -> ()
    %cst_12 = arith.constant dense<0.000000e+00> : vector<4x8x8xf32>
    %37 = tpu.matmul %36, %24, %cst_12 {dimension_numbers = #tpu.dot_dimension_numbers<[2], [1], [1], [2], [0, 0, 0, 1, 1, 2], [0], [0]>} : vector<4x8x8xbf16>, vector<4x8x8xbf16>, vector<4x8x8xf32> -> vector<4x8x8xf32>
    "tpu.trace_stop"() : () -> ()
    %38 = arith.truncf %37 : vector<4x8x8xf32> to vector<4x8x8xbf16>
    %c0_13 = arith.constant 0 : index
    %c0_14 = arith.constant 0 : index
    %c0_15 = arith.constant 0 : index
    %c0_16 = arith.constant 0 : index
    %39 = vector.load %arg5[%c0_13, %c0_14, %c0_15, %c0_16] : memref<1x4x8x32xbf16, #tpu.memory_space<vmem>>, vector<1x4x8x32xbf16>
    %40 = vector.shape_cast %39 : vector<1x4x8x32xbf16> to vector<4x8x32xbf16>
    "tpu.trace_start"() <{level = 10 : i32, message = "hqd,hdo->hqo"}> : () -> ()
    %cst_17 = arith.constant dense<0.000000e+00> : vector<4x8x32xf32>
    %41 = tpu.matmul %38, %40, %cst_17 {dimension_numbers = #tpu.dot_dimension_numbers<[2], [1], [1], [2], [0, 0, 0, 1, 1, 2], [0], [0]>} : vector<4x8x8xbf16>, vector<4x8x32xbf16>, vector<4x8x32xf32> -> vector<4x8x32xf32>
    "tpu.trace_stop"() : () -> ()
    %cst_18 = arith.constant dense<0.000000e+00> : vector<8x32xf32>
    %42 = vector.multi_reduction <add>, %41, %cst_18 [0] : vector<4x8x32xf32> to vector<8x32xf32>
    %c0_19 = arith.constant 0 : index
    %c0_20 = arith.constant 0 : index
    %c0_21 = arith.constant 0 : index
    %43 = vector.load %arg6[%c0_19, %c0_20, %c0_21] : memref<1x1x32xf32, #tpu.memory_space<vmem>>, vector<1x1x32xf32>
    %44 = vector.shape_cast %43 : vector<1x1x32xf32> to vector<1x32xf32>
    %45 = vector.broadcast %44 : vector<1x32xf32> to vector<8x32xf32>
    %46 = arith.addf %42, %45 : vector<8x32xf32>
    %47 = arith.addf %4, %46 : vector<8x32xf32>
    %c0_22 = arith.constant 0 : index
    %c0_23 = arith.constant 0 : index
    %c0_24 = arith.constant 0 : index
    %48 = vector.load %arg7[%c0_22, %c0_23, %c0_24] : memref<1x1x32xf32, #tpu.memory_space<vmem>>, vector<1x1x32xf32>
    %49 = vector.shape_cast %48 : vector<1x1x32xf32> to vector<1x32xf32>
    %c0_25 = arith.constant 0 : index
    %c0_26 = arith.constant 0 : index
    %c0_27 = arith.constant 0 : index
    %50 = vector.load %arg8[%c0_25, %c0_26, %c0_27] : memref<1x1x32xf32, #tpu.memory_space<vmem>>, vector<1x1x32xf32>
    %51 = vector.shape_cast %50 : vector<1x1x32xf32> to vector<1x32xf32>
    %cst_28 = arith.constant dense<0.000000e+00> : vector<8xf32>
    %52 = vector.multi_reduction <add>, %47, %cst_28 [1] : vector<8x32xf32> to vector<8xf32>
    %53 = vector.shape_cast %52 : vector<8xf32> to vector<8x1xf32>
    %cst_29 = arith.constant 3.200000e+01 : f32
    %54 = vector.broadcast %cst_29 : f32 to vector<8x1xf32>
    %55 = arith.divf %53, %54 : vector<8x1xf32>
    %56 = vector.broadcast %55 : vector<8x1xf32> to vector<8x32xf32>
    %57 = arith.subf %47, %56 : vector<8x32xf32>
    %58 = vector.broadcast %55 : vector<8x1xf32> to vector<8x32xf32>
    %59 = arith.subf %47, %58 : vector<8x32xf32>
    %60 = arith.mulf %57, %59 : vector<8x32xf32>
    %cst_30 = arith.constant dense<0.000000e+00> : vector<8xf32>
    %61 = vector.multi_reduction <add>, %60, %cst_30 [1] : vector<8x32xf32> to vector<8xf32>
    %62 = vector.shape_cast %61 : vector<8xf32> to vector<8x1xf32>
    %cst_31 = arith.constant 3.200000e+01 : f32
    %63 = vector.broadcast %cst_31 : f32 to vector<8x1xf32>
    %64 = arith.divf %62, %63 : vector<8x1xf32>
    %65 = vector.broadcast %55 : vector<8x1xf32> to vector<8x32xf32>
    %66 = arith.subf %47, %65 : vector<8x32xf32>
    %cst_32 = arith.constant 9.99999996E-13 : f32
    %67 = vector.broadcast %cst_32 : f32 to vector<8x1xf32>
    %68 = arith.addf %64, %67 : vector<8x1xf32>
    %69 = math.rsqrt %68 : vector<8x1xf32>
    %70 = vector.broadcast %69 : vector<8x1xf32> to vector<8x32xf32>
    %71 = arith.mulf %66, %70 : vector<8x32xf32>
    %72 = vector.broadcast %49 : vector<1x32xf32> to vector<8x32xf32>
    %73 = arith.mulf %71, %72 : vector<8x32xf32>
    %74 = vector.broadcast %51 : vector<1x32xf32> to vector<8x32xf32>
    %75 = arith.addf %73, %74 : vector<8x32xf32>
    %76 = arith.truncf %75 : vector<8x32xf32> to vector<8x32xbf16>
    %c0_33 = arith.constant 0 : index
    %c0_34 = arith.constant 0 : index
    %c0_35 = arith.constant 0 : index
    %77 = vector.load %arg9[%c0_33, %c0_34, %c0_35] : memref<1x32x128xbf16, #tpu.memory_space<vmem>>, vector<1x32x128xbf16>
    %78 = vector.shape_cast %77 : vector<1x32x128xbf16> to vector<32x128xbf16>
    %cst_36 = arith.constant dense<0.000000e+00> : vector<8x128xf32>
    %79 = tpu.matmul %76, %78, %cst_36 {dimension_numbers = #tpu.dot_dimension_numbers<[1], [0], [0], [1], [0, 0, 1, 1], [], []>} : vector<8x32xbf16>, vector<32x128xbf16>, vector<8x128xf32> -> vector<8x128xf32>
    %c0_37 = arith.constant 0 : index
    %c0_38 = arith.constant 0 : index
    %c0_39 = arith.constant 0 : index
    %80 = vector.load %arg10[%c0_37, %c0_38, %c0_39] : memref<1x1x128xf32, #tpu.memory_space<vmem>>, vector<1x1x128xf32>
    %81 = vector.shape_cast %80 : vector<1x1x128xf32> to vector<1x128xf32>
    %82 = vector.broadcast %81 : vector<1x128xf32> to vector<8x128xf32>
    %83 = arith.addf %79, %82 : vector<8x128xf32>
    %cst_40 = arith.constant 5.000000e-01 : f32
    %84 = vector.broadcast %cst_40 : f32 to vector<8x128xf32>
    %85 = arith.mulf %84, %83 : vector<8x128xf32>
    %cst_41 = arith.constant 4.471500e-02 : f32
    %86 = vector.broadcast %cst_41 : f32 to vector<8x128xf32>
    %87 = arith.mulf %86, %83 : vector<8x128xf32>
    %88 = arith.mulf %87, %83 : vector<8x128xf32>
    %89 = arith.mulf %88, %83 : vector<8x128xf32>
    %90 = arith.addf %83, %89 : vector<8x128xf32>
    %cst_42 = arith.constant 0.797884583 : f32
    %91 = vector.broadcast %cst_42 : f32 to vector<8x128xf32>
    %92 = arith.mulf %91, %90 : vector<8x128xf32>
    %93 = math.tanh %92 : vector<8x128xf32>
    %cst_43 = arith.constant 1.000000e+00 : f32
    %94 = vector.broadcast %cst_43 : f32 to vector<8x128xf32>
    %95 = arith.addf %94, %93 : vector<8x128xf32>
    %96 = arith.mulf %85, %95 : vector<8x128xf32>
    %97 = arith.truncf %96 : vector<8x128xf32> to vector<8x128xbf16>
    %c0_44 = arith.constant 0 : index
    %c0_45 = arith.constant 0 : index
    %c0_46 = arith.constant 0 : index
    %98 = vector.load %arg11[%c0_44, %c0_45, %c0_46] : memref<1x128x32xbf16, #tpu.memory_space<vmem>>, vector<1x128x32xbf16>
    %99 = vector.shape_cast %98 : vector<1x128x32xbf16> to vector<128x32xbf16>
    %cst_47 = arith.constant dense<0.000000e+00> : vector<8x32xf32>
    %100 = tpu.matmul %97, %99, %cst_47 {dimension_numbers = #tpu.dot_dimension_numbers<[1], [0], [0], [1], [0, 0, 1, 1], [], []>} : vector<8x128xbf16>, vector<128x32xbf16>, vector<8x32xf32> -> vector<8x32xf32>
    %c0_48 = arith.constant 0 : index
    %c0_49 = arith.constant 0 : index
    %c0_50 = arith.constant 0 : index
    %101 = vector.load %arg12[%c0_48, %c0_49, %c0_50] : memref<1x1x32xf32, #tpu.memory_space<vmem>>, vector<1x1x32xf32>
    %102 = vector.shape_cast %101 : vector<1x1x32xf32> to vector<1x32xf32>
    %103 = vector.broadcast %102 : vector<1x32xf32> to vector<8x32xf32>
    %104 = arith.addf %100, %103 : vector<8x32xf32>
    %105 = arith.addf %75, %104 : vector<8x32xf32>
    %c0_51 = arith.constant 0 : index
    %c0_52 = arith.constant 0 : index
    %c0_53 = arith.constant 0 : index
    %106 = vector.load %arg13[%c0_51, %c0_52, %c0_53] : memref<1x1x32xf32, #tpu.memory_space<vmem>>, vector<1x1x32xf32>
    %107 = vector.shape_cast %106 : vector<1x1x32xf32> to vector<1x32xf32>
    %c0_54 = arith.constant 0 : index
    %c0_55 = arith.constant 0 : index
    %c0_56 = arith.constant 0 : index
    %108 = vector.load %arg14[%c0_54, %c0_55, %c0_56] : memref<1x1x32xf32, #tpu.memory_space<vmem>>, vector<1x1x32xf32>
    %109 = vector.shape_cast %108 : vector<1x1x32xf32> to vector<1x32xf32>
    %cst_57 = arith.constant dense<0.000000e+00> : vector<8xf32>
    %110 = vector.multi_reduction <add>, %105, %cst_57 [1] : vector<8x32xf32> to vector<8xf32>
    %111 = vector.shape_cast %110 : vector<8xf32> to vector<8x1xf32>
    %cst_58 = arith.constant 3.200000e+01 : f32
    %112 = vector.broadcast %cst_58 : f32 to vector<8x1xf32>
    %113 = arith.divf %111, %112 : vector<8x1xf32>
    %114 = vector.broadcast %113 : vector<8x1xf32> to vector<8x32xf32>
    %115 = arith.subf %105, %114 : vector<8x32xf32>
    %116 = vector.broadcast %113 : vector<8x1xf32> to vector<8x32xf32>
    %117 = arith.subf %105, %116 : vector<8x32xf32>
    %118 = arith.mulf %115, %117 : vector<8x32xf32>
    %cst_59 = arith.constant dense<0.000000e+00> : vector<8xf32>
    %119 = vector.multi_reduction <add>, %118, %cst_59 [1] : vector<8x32xf32> to vector<8xf32>
    %120 = vector.shape_cast %119 : vector<8xf32> to vector<8x1xf32>
    %cst_60 = arith.constant 3.200000e+01 : f32
    %121 = vector.broadcast %cst_60 : f32 to vector<8x1xf32>
    %122 = arith.divf %120, %121 : vector<8x1xf32>
    %123 = vector.broadcast %113 : vector<8x1xf32> to vector<8x32xf32>
    %124 = arith.subf %105, %123 : vector<8x32xf32>
    %cst_61 = arith.constant 9.99999996E-13 : f32
    %125 = vector.broadcast %cst_61 : f32 to vector<8x1xf32>
    %126 = arith.addf %122, %125 : vector<8x1xf32>
    %127 = math.rsqrt %126 : vector<8x1xf32>
    %128 = vector.broadcast %127 : vector<8x1xf32> to vector<8x32xf32>
    %129 = arith.mulf %124, %128 : vector<8x32xf32>
    %130 = vector.broadcast %107 : vector<1x32xf32> to vector<8x32xf32>
    %131 = arith.mulf %129, %130 : vector<8x32xf32>
    %132 = vector.broadcast %109 : vector<1x32xf32> to vector<8x32xf32>
    %133 = arith.addf %131, %132 : vector<8x32xf32>
    %c0_62 = arith.constant 0 : index
    %c0_63 = arith.constant 0 : index
    %c0_64 = arith.constant 0 : index
    %134 = vector.load %arg15[%c0_62, %c0_63, %c0_64] : memref<1x8x32xf32, #tpu.memory_space<vmem>>, vector<1x8x32xf32>
    %135 = vector.shape_cast %134 : vector<1x8x32xf32> to vector<8x32xf32>
    %136 = vector.shape_cast %133 : vector<8x32xf32> to vector<1x8x32xf32>
    tpu.vector_store %arg15[%c0_62, %c0_63, %c0_64], %136 {strides = array<i32>} : memref<1x8x32xf32, #tpu.memory_space<vmem>>, vector<1x8x32xf32>,
    return
  }
  func.func @transform_0(%arg0: i32, %arg1: i32) -> (i32, i32, i32) {
    %c0_i32 = arith.constant 0 : i32
    %c0_i32_0 = arith.constant 0 : i32
    %c0_i32_1 = arith.constant 0 : i32
    return %arg0, %c0_i32, %c0_i32_0 : i32, i32, i32
  }
  func.func @transform_1(%arg0: i32, %arg1: i32) -> (i32, i32, i32) {
    %c0_i32 = arith.constant 0 : i32
    %c0_i32_0 = arith.constant 0 : i32
    %c0_i32_1 = arith.constant 0 : i32
    return %arg1, %c0_i32, %c0_i32_0 : i32, i32, i32
  }
  func.func @transform_2(%arg0: i32, %arg1: i32) -> (i32, i32, i32) {
    %c0_i32 = arith.constant 0 : i32
    %c0_i32_0 = arith.constant 0 : i32
    %c0_i32_1 = arith.constant 0 : i32
    return %arg1, %c0_i32, %c0_i32_0 : i32, i32, i32
  }
  func.func @transform_3(%arg0: i32, %arg1: i32) -> (i32, i32, i32, i32) {
    %c0_i32 = arith.constant 0 : i32
    %c0_i32_0 = arith.constant 0 : i32
    %c0_i32_1 = arith.constant 0 : i32
    %c0_i32_2 = arith.constant 0 : i32
    return %arg1, %c0_i32, %c0_i32_0, %c0_i32_1 : i32, i32, i32, i32
  }
  func.func @transform_4(%arg0: i32, %arg1: i32) -> (i32, i32, i32) {
    %c0_i32 = arith.constant 0 : i32
    %c0_i32_0 = arith.constant 0 : i32
    %c0_i32_1 = arith.constant 0 : i32
    return %arg1, %c0_i32, %c0_i32_0 : i32, i32, i32
  }
  func.func @transform_5(%arg0: i32, %arg1: i32) -> (i32, i32, i32) {
    %c0_i32 = arith.constant 0 : i32
    %c0_i32_0 = arith.constant 0 : i32
    %c0_i32_1 = arith.constant 0 : i32
    return %arg1, %c0_i32, %c0_i32_0 : i32, i32, i32
  }
  func.func @transform_6(%arg0: i32, %arg1: i32) -> (i32, i32, i32) {
    %c0_i32 = arith.constant 0 : i32
    %c0_i32_0 = arith.constant 0 : i32
    %c0_i32_1 = arith.constant 0 : i32
    return %arg1, %c0_i32, %c0_i32_0 : i32, i32, i32
  }
  func.func @transform_7(%arg0: i32, %arg1: i32) -> (i32, i32, i32) {
    %c0_i32 = arith.constant 0 : i32
    %c0_i32_0 = arith.constant 0 : i32
    %c0_i32_1 = arith.constant 0 : i32
    return %arg1, %c0_i32, %c0_i32_0 : i32, i32, i32
  }
  func.func @transform_8(%arg0: i32, %arg1: i32) -> (i32, i32, i32) {
    %c0_i32 = arith.constant 0 : i32
    %c0_i32_0 = arith.constant 0 : i32
    %c0_i32_1 = arith.constant 0 : i32
    return %arg1, %c0_i32, %c0_i32_0 : i32, i32, i32
  }
  func.func @transform_9(%arg0: i32, %arg1: i32) -> (i32, i32, i32) {
    %c0_i32 = arith.constant 0 : i32
    %c0_i32_0 = arith.constant 0 : i32
    %c0_i32_1 = arith.constant 0 : i32
    return %arg1, %c0_i32, %c0_i32_0 : i32, i32, i32
  }
  func.func @transform_10(%arg0: i32, %arg1: i32) -> (i32, i32, i32) {
    %c0_i32 = arith.constant 0 : i32
    %c0_i32_0 = arith.constant 0 : i32
    %c0_i32_1 = arith.constant 0 : i32
    return %arg1, %c0_i32, %c0_i32_0 : i32, i32, i32
  }
  func.func @transform_11(%arg0: i32, %arg1: i32) -> (i32, i32, i32) {
    %c0_i32 = arith.constant 0 : i32
    %c0_i32_0 = arith.constant 0 : i32
    %c0_i32_1 = arith.constant 0 : i32
    return %arg1, %c0_i32, %c0_i32_0 : i32, i32, i32
  }
  func.func @transform_12(%arg0: i32, %arg1: i32) -> (i32, i32, i32) {
    %c0_i32 = arith.constant 0 : i32
    %c0_i32_0 = arith.constant 0 : i32
    %c0_i32_1 = arith.constant 0 : i32
    return %arg1, %c0_i32, %c0_i32_0 : i32, i32, i32
  }
  func.func @transform_13(%arg0: i32, %arg1: i32) -> (i32, i32, i32) {
    %c0_i32 = arith.constant 0 : i32
    %c0_i32_0 = arith.constant 0 : i32
    %c0_i32_1 = arith.constant 0 : i32
    return %arg0, %c0_i32, %c0_i32_0 : i32, i32, i32
  }
}

</mosaic_0001>

<llo_original>
// kernel: tpu_custom_call.1
$region0: #{tpu_custom_call.1}
  #allocation0 [shape = 'u32[]', space=smem, size = 0x4, offset = 0x4, fixed_abs, tag = 'smem constant byte address 0x4 - core index']
  #allocation1 [shape = 'u32[144,128]{1,0:T(1,128)}', space=vmem, size = 0x12000, scoped, tag = 'internal scratch']
  %s0 = inlined_call_operand.vmem [shape: f32[2,8,32], index: 0, kind: input, shape index: {}]
  %s1 = inlined_call_operand.vmem [shape: bf16[2,32,96], index: 1, kind: input, shape index: {}]
  %s2 = inlined_call_operand.vmem [shape: f32[2,1,96], index: 2, kind: input, shape index: {}]
  %s3 = inlined_call_operand.vmem [shape: bf16[2,4,8,32], index: 3, kind: input, shape index: {}]
  %s4 = inlined_call_operand.vmem [shape: f32[2,1,32], index: 4, kind: input, shape index: {}]
  %s5 = inlined_call_operand.vmem [shape: f32[2,1,32], index: 5, kind: input, shape index: {}]
  %s6 = inlined_call_operand.vmem [shape: f32[2,1,32], index: 6, kind: input, shape index: {}]
  %s7 = inlined_call_operand.vmem [shape: bf16[2,32,128], index: 7, kind: input, shape index: {}]
  %s8 = inlined_call_operand.vmem [shape: f32[2,1,128], index: 8, kind: input, shape index: {}]
  %s9 = inlined_call_operand.vmem [shape: bf16[2,128,32], index: 9, kind: input, shape index: {}]
  %s10 = inlined_call_operand.vmem [shape: f32[2,1,32], index: 10, kind: input, shape index: {}]
  %s11 = inlined_call_operand.vmem [shape: f32[2,1,32], index: 11, kind: input, shape index: {}]
  %s12 = inlined_call_operand.vmem [shape: f32[2,1,32], index: 12, kind: input, shape index: {}]
  %s13 = inlined_call_operand.hbm [shape: f32[2,8,32], index: 13, kind: output, shape index: {}]
  %s14 = sld [smem:[#allocation0]]
  $region89: #{tpu_custom_call.1} parent=0
    _
  %s16 = ssub.s32 1, %s14
  %s17 = scalar_select 0, %s16, %s14
  $region1: #{tpu_custom_call.1} parent=0
    #allocation2 [shape = 'u8[8192]{0}', space=vmem, size = 0x2000, scoped, tag = 'output window, operand 0']
    #allocation3 [shape = 's32[2]{0}', space=sflag, size = 0x8, scoped, tag = 'scoped memory for tpu_custom_call.1']
    %18 = vsyncpa [#allocation3], 0
    %s19 = scalar_lea.sflag [#allocation3], 1
    %20 = vsyncpa %s19, 0
    loop: start=0, step=1, limit=6
    $region2: #{tpu_custom_call.1} parent=1 // loop_pre_header
      _
    $region3: #{tpu_custom_call.1} parent=1 // loop_header
      %s22 = sphi 0, %s26
      %p23 = scmp.ge.s32.totalorder %s22, 6
      %s29 = sphi 0, %s41
      %s30 = sphi 0, %s37
      %s31 = sphi 0, %s29
      %s32 = sphi 0, %s30
      %s33 = sphi 0, %s31
      %s34 = sphi 0, %s32
      %s44 = sphi 0, %s46
      %s47 = sphi 0, %s44
      %s48 = sphi 0, %s47
      %s64 = sphi 0, %s48
      %s70 = sphi 0, %s72
      %s73 = sphi 0, %s70
      %s74 = sphi 0, %s73
      %s90 = sphi 0, %s74
      %s96 = sphi 0, %s98
      %s99 = sphi 0, %s96
      %s100 = sphi 0, %s99
      %s116 = sphi 0, %s100
      %s122 = sphi 0, %s124
      %s125 = sphi 0, %s122
      %s126 = sphi 0, %s125
      %s142 = sphi 0, %s126
      %s148 = sphi 0, %s150
      %s151 = sphi 0, %s148
      %s152 = sphi 0, %s151
      %s168 = sphi 0, %s152
      %s174 = sphi 0, %s176
      %s177 = sphi 0, %s174
      %s178 = sphi 0, %s177
      %s194 = sphi 0, %s178
      %s200 = sphi 0, %s202
      %s203 = sphi 0, %s200
      %s204 = sphi 0, %s203
      %s220 = sphi 0, %s204
      %s226 = sphi 0, %s228
      %s229 = sphi 0, %s226
      %s230 = sphi 0, %s229
      %s246 = sphi 0, %s230
      %s252 = sphi 0, %s254
      %s255 = sphi 0, %s252
      %s256 = sphi 0, %s255
      %s272 = sphi 0, %s256
      %s278 = sphi 0, %s280
      %s281 = sphi 0, %s278
      %s282 = sphi 0, %s281
      %s298 = sphi 0, %s282
      %s304 = sphi 0, %s306
      %s307 = sphi 0, %s304
      %s308 = sphi 0, %s307
      %s324 = sphi 0, %s308
      %s330 = sphi 0, %s332
      %s333 = sphi 0, %s330
      %s334 = sphi 0, %s333
      %s350 = sphi 0, %s334
      %s356 = sphi 0, %s358
      %s359 = sphi 0, %s356
      %s360 = sphi 0, %s359
      %s376 = sphi 0, %s360
      %s382 = sphi 0, %s384
      %s385 = sphi 0, %s382
      %s386 = sphi 0, %s385
      %s402 = sphi 0, %s386
    $region4: #{tpu_custom_call.1} parent=1 // loop_header_branch
      %25 = sbr.rel (%p23) target = $region8
    $region5: #{tpu_custom_call.1} parent=1 // loop_body
      %s27 = ssub.s32 %s22, 1
      %s28 = ssub.s32 %s22, 2
      %s35 = sadd.s32 1, %s30
      %p36 = scmp.ge.s32.totalorder %s35, 2
      %s37 = scalar_select %p36, 0, %s35
      %s38 = sadd.s32 1, %s29
      %s39 = scalar_select %p36, %s38, %s29
      %p40 = scmp.ge.s32.totalorder %s39, 2
      %s41 = scalar_select %p40, 0, %s39
      %s42 = ssub.s32 %s29, %s41
      %p43 = scmp.eq.s32.totalorder %s42, 0
      %s45 = sadd.s32 %s44, 1
      %s46 = scalar_select %p43, %s44, %s45
      %p49 = pneg %p43
      %p50 = scmp.eq.s32.totalorder %s22, 3
      %p51 = por %p49, %p50
      %p52 = scmp.ne.s32.totalorder %s44, %s47
      %p53 = scmp.eq.s32.totalorder %s22, 0
      %p54 = por %p52, %p53
      %p55 = scmp.ne.s32.totalorder %s44, %s47
      %p56 = scmp.eq.s32.totalorder %s27, 3
      %p57 = por %p55, %p56
      %p58 = scmp.ne.s32.totalorder %s47, %s48
      %p59 = scmp.eq.s32.totalorder %s27, 0
      %p60 = por %p58, %p59
      %p61 = scmp.ne.s32.totalorder %s47, %s48
      %p62 = scmp.eq.s32.totalorder %s28, 3
      %p63 = por %p61, %p62
      %p65 = scmp.ne.s32.totalorder %s48, %s64
      %p66 = scmp.eq.s32.totalorder %s28, 0
      %p67 = por %p65, %p66
      %s68 = ssub.s32 %s30, %s37
      %p69 = scmp.eq.s32.totalorder %s68, 0
      %s71 = sadd.s32 %s70, 1
      %s72 = scalar_select %p69, %s70, %s71
      %p75 = pneg %p69
      %p76 = scmp.eq.s32.totalorder %s22, 3
      %p77 = por %p75, %p76
      %p78 = scmp.ne.s32.totalorder %s70, %s73
      %p79 = scmp.eq.s32.totalorder %s22, 0
      %p80 = por %p78, %p79
      %p81 = scmp.ne.s32.totalorder %s70, %s73
      %p82 = scmp.eq.s32.totalorder %s27, 3
      %p83 = por %p81, %p82
      %p84 = scmp.ne.s32.totalorder %s73, %s74
      %p85 = scmp.eq.s32.totalorder %s27, 0
      %p86 = por %p84, %p85
      %p87 = scmp.ne.s32.totalorder %s73, %s74
      %p88 = scmp.eq.s32.totalorder %s28, 3
      %p89 = por %p87, %p88
      %p91 = scmp.ne.s32.totalorder %s74, %s90
      %p92 = scmp.eq.s32.totalorder %s28, 0
      %p93 = por %p91, %p92
      %s94 = ssub.s32 %s30, %s37
      %p95 = scmp.eq.s32.totalorder %s94, 0
      %s97 = sadd.s32 %s96, 1
      %s98 = scalar_select %p95, %s96, %s97
      %p101 = pneg %p95
      %p102 = scmp.eq.s32.totalorder %s22, 3
      %p103 = por %p101, %p102
      %p104 = scmp.ne.s32.totalorder %s96, %s99
      %p105 = scmp.eq.s32.totalorder %s22, 0
      %p106 = por %p104, %p105
      %p107 = scmp.ne.s32.totalorder %s96, %s99
      %p108 = scmp.eq.s32.totalorder %s27, 3
      %p109 = por %p107, %p108
      %p110 = scmp.ne.s32.totalorder %s99, %s100
      %p111 = scmp.eq.s32.totalorder %s27, 0
      %p112 = por %p110, %p111
      %p113 = scmp.ne.s32.totalorder %s99, %s100
      %p114 = scmp.eq.s32.totalorder %s28, 3
      %p115 = por %p113, %p114
      %p117 = scmp.ne.s32.totalorder %s100, %s116
      %p118 = scmp.eq.s32.totalorder %s28, 0
      %p119 = por %p117, %p118
      %s120 = ssub.s32 %s30, %s37
      %p121 = scmp.eq.s32.totalorder %s120, 0
      %s123 = sadd.s32 %s122, 1
      %s124 = scalar_select %p121, %s122, %s123
      %p127 = pneg %p121
      %p128 = scmp.eq.s32.totalorder %s22, 3
      %p129 = por %p127, %p128
      %p130 = scmp.ne.s32.totalorder %s122, %s125
      %p131 = scmp.eq.s32.totalorder %s22, 0
      %p132 = por %p130, %p131
      %p133 = scmp.ne.s32.totalorder %s122, %s125
      %p134 = scmp.eq.s32.totalorder %s27, 3
      %p135 = por %p133, %p134
      %p136 = scmp.ne.s32.totalorder %s125, %s126
      %p137 = scmp.eq.s32.totalorder %s27, 0
      %p138 = por %p136, %p137
      %p139 = scmp.ne.s32.totalorder %s125, %s126
      %p140 = scmp.eq.s32.totalorder %s28, 3
      %p141 = por %p139, %p140
      %p143 = scmp.ne.s32.totalorder %s126, %s142
      %p144 = scmp.eq.s32.totalorder %s28, 0
      %p145 = por %p143, %p144
      %s146 = ssub.s32 %s30, %s37
      %p147 = scmp.eq.s32.totalorder %s146, 0
      %s149 = sadd.s32 %s148, 1
      %s150 = scalar_select %p147, %s148, %s149
      %p153 = pneg %p147
      %p154 = scmp.eq.s32.totalorder %s22, 3
      %p155 = por %p153, %p154
      %p156 = scmp.ne.s32.totalorder %s148, %s151
      %p157 = scmp.eq.s32.totalorder %s22, 0
      %p158 = por %p156, %p157
      %p159 = scmp.ne.s32.totalorder %s148, %s151
      %p160 = scmp.eq.s32.totalorder %s27, 3
      %p161 = por %p159, %p160
      %p162 = scmp.ne.s32.totalorder %s151, %s152
      %p163 = scmp.eq.s32.totalorder %s27, 0
      %p164 = por %p162, %p163
      %p165 = scmp.ne.s32.totalorder %s151, %s152
      %p166 = scmp.eq.s32.totalorder %s28, 3
      %p167 = por %p165, %p166
      %p169 = scmp.ne.s32.totalorder %s152, %s168
      %p170 = scmp.eq.s32.totalorder %s28, 0
      %p171 = por %p169, %p170
      %s172 = ssub.s32 %s30, %s37
      %p173 = scmp.eq.s32.totalorder %s172, 0
      %s175 = sadd.s32 %s174, 1
      %s176 = scalar_select %p173, %s174, %s175
      %p179 = pneg %p173
      %p180 = scmp.eq.s32.totalorder %s22, 3
      %p181 = por %p179, %p180
      %p182 = scmp.ne.s32.totalorder %s174, %s177
      %p183 = scmp.eq.s32.totalorder %s22, 0
      %p184 = por %p182, %p183
      %p185 = scmp.ne.s32.totalorder %s174, %s177
      %p186 = scmp.eq.s32.totalorder %s27, 3
      %p187 = por %p185, %p186
      %p188 = scmp.ne.s32.totalorder %s177, %s178
      %p189 = scmp.eq.s32.totalorder %s27, 0
      %p190 = por %p188, %p189
      %p191 = scmp.ne.s32.totalorder %s177, %s178
      %p192 = scmp.eq.s32.totalorder %s28, 3
      %p193 = por %p191, %p192
      %p195 = scmp.ne.s32.totalorder %s178, %s194
      %p196 = scmp.eq.s32.totalorder %s28, 0
      %p197 = por %p195, %p196
      %s198 = ssub.s32 %s30, %s37
      %p199 = scmp.eq.s32.totalorder %s198, 0
      %s201 = sadd.s32 %s200, 1
      %s202 = scalar_select %p199, %s200, %s201
      %p205 = pneg %p199
      %p206 = scmp.eq.s32.totalorder %s22, 3
      %p207 = por %p205, %p206
      %p208 = scmp.ne.s32.totalorder %s200, %s203
      %p209 = scmp.eq.s32.totalorder %s22, 0
      %p210 = por %p208, %p209
      %p211 = scmp.ne.s32.totalorder %s200, %s203
      %p212 = scmp.eq.s32.totalorder %s27, 3
      %p213 = por %p211, %p212
      %p214 = scmp.ne.s32.totalorder %s203, %s204
      %p215 = scmp.eq.s32.totalorder %s27, 0
      %p216 = por %p214, %p215
      %p217 = scmp.ne.s32.totalorder %s203, %s204
      %p218 = scmp.eq.s32.totalorder %s28, 3
      %p219 = por %p217, %p218
      %p221 = scmp.ne.s32.totalorder %s204, %s220
      %p222 = scmp.eq.s32.totalorder %s28, 0
      %p223 = por %p221, %p222
      %s224 = ssub.s32 %s30, %s37
      %p225 = scmp.eq.s32.totalorder %s224, 0
      %s227 = sadd.s32 %s226, 1
      %s228 = scalar_select %p225, %s226, %s227
      %p231 = pneg %p225
      %p232 = scmp.eq.s32.totalorder %s22, 3
      %p233 = por %p231, %p232
      %p234 = scmp.ne.s32.totalorder %s226, %s229
      %p235 = scmp.eq.s32.totalorder %s22, 0
      %p236 = por %p234, %p235
      %p237 = scmp.ne.s32.totalorder %s226, %s229
      %p238 = scmp.eq.s32.totalorder %s27, 3
      %p239 = por %p237, %p238
      %p240 = scmp.ne.s32.totalorder %s229, %s230
      %p241 = scmp.eq.s32.totalorder %s27, 0
      %p242 = por %p240, %p241
      %p243 = scmp.ne.s32.totalorder %s229, %s230
      %p244 = scmp.eq.s32.totalorder %s28, 3
      %p245 = por %p243, %p244
      %p247 = scmp.ne.s32.totalorder %s230, %s246
      %p248 = scmp.eq.s32.totalorder %s28, 0
      %p249 = por %p247, %p248
      %s250 = ssub.s32 %s30, %s37
      %p251 = scmp.eq.s32.totalorder %s250, 0
      %s253 = sadd.s32 %s252, 1
      %s254 = scalar_select %p251, %s252, %s253
      %p257 = pneg %p251
      %p258 = scmp.eq.s32.totalorder %s22, 3
      %p259 = por %p257, %p258
      %p260 = scmp.ne.s32.totalorder %s252, %s255
      %p261 = scmp.eq.s32.totalorder %s22, 0
      %p262 = por %p260, %p261
      %p263 = scmp.ne.s32.totalorder %s252, %s255
      %p264 = scmp.eq.s32.totalorder %s27, 3
      %p265 = por %p263, %p264
      %p266 = scmp.ne.s32.totalorder %s255, %s256
      %p267 = scmp.eq.s32.totalorder %s27, 0
      %p268 = por %p266, %p267
      %p269 = scmp.ne.s32.totalorder %s255, %s256
      %p270 = scmp.eq.s32.totalorder %s28, 3
      %p271 = por %p269, %p270
      %p273 = scmp.ne.s32.totalorder %s256, %s272
      %p274 = scmp.eq.s32.totalorder %s28, 0
      %p275 = por %p273, %p274
      %s276 = ssub.s32 %s30, %s37
      %p277 = scmp.eq.s32.totalorder %s276, 0
      %s279 = sadd.s32 %s278, 1
      %s280 = scalar_select %p277, %s278, %s279
      %p283 = pneg %p277
      %p284 = scmp.eq.s32.totalorder %s22, 3
      %p285 = por %p283, %p284
      %p286 = scmp.ne.s32.totalorder %s278, %s281
      %p287 = scmp.eq.s32.totalorder %s22, 0
      %p288 = por %p286, %p287
      %p289 = scmp.ne.s32.totalorder %s278, %s281
      %p290 = scmp.eq.s32.totalorder %s27, 3
      %p291 = por %p289, %p290
      %p292 = scmp.ne.s32.totalorder %s281, %s282
      %p293 = scmp.eq.s32.totalorder %s27, 0
      %p294 = por %p292, %p293
      %p295 = scmp.ne.s32.totalorder %s281, %s282
      %p296 = scmp.eq.s32.totalorder %s28, 3
      %p297 = por %p295, %p296
      %p299 = scmp.ne.s32.totalorder %s282, %s298
      %p300 = scmp.eq.s32.totalorder %s28, 0
      %p301 = por %p299, %p300
      %s302 = ssub.s32 %s30, %s37
      %p303 = scmp.eq.s32.totalorder %s302, 0
      %s305 = sadd.s32 %s304, 1
      %s306 = scalar_select %p303, %s304, %s305
      %p309 = pneg %p303
      %p310 = scmp.eq.s32.totalorder %s22, 3
      %p311 = por %p309, %p310
      %p312 = scmp.ne.s32.totalorder %s304, %s307
      %p313 = scmp.eq.s32.totalorder %s22, 0
      %p314 = por %p312, %p313
      %p315 = scmp.ne.s32.totalorder %s304, %s307
      %p316 = scmp.eq.s32.totalorder %s27, 3
      %p317 = por %p315, %p316
      %p318 = scmp.ne.s32.totalorder %s307, %s308
      %p319 = scmp.eq.s32.totalorder %s27, 0
      %p320 = por %p318, %p319
      %p321 = scmp.ne.s32.totalorder %s307, %s308
      %p322 = scmp.eq.s32.totalorder %s28, 3
      %p323 = por %p321, %p322
      %p325 = scmp.ne.s32.totalorder %s308, %s324
      %p326 = scmp.eq.s32.totalorder %s28, 0
      %p327 = por %p325, %p326
      %s328 = ssub.s32 %s30, %s37
      %p329 = scmp.eq.s32.totalorder %s328, 0
      %s331 = sadd.s32 %s330, 1
      %s332 = scalar_select %p329, %s330, %s331
      %p335 = pneg %p329
      %p336 = scmp.eq.s32.totalorder %s22, 3
      %p337 = por %p335, %p336
      %p338 = scmp.ne.s32.totalorder %s330, %s333
      %p339 = scmp.eq.s32.totalorder %s22, 0
      %p340 = por %p338, %p339
      %p341 = scmp.ne.s32.totalorder %s330, %s333
      %p342 = scmp.eq.s32.totalorder %s27, 3
      %p343 = por %p341, %p342
      %p344 = scmp.ne.s32.totalorder %s333, %s334
      %p345 = scmp.eq.s32.totalorder %s27, 0
      %p346 = por %p344, %p345
      %p347 = scmp.ne.s32.totalorder %s333, %s334
      %p348 = scmp.eq.s32.totalorder %s28, 3
      %p349 = por %p347, %p348
      %p351 = scmp.ne.s32.totalorder %s334, %s350
      %p352 = scmp.eq.s32.totalorder %s28, 0
      %p353 = por %p351, %p352
      %s354 = ssub.s32 %s30, %s37
      %p355 = scmp.eq.s32.totalorder %s354, 0
      %s357 = sadd.s32 %s356, 1
      %s358 = scalar_select %p355, %s356, %s357
      %p361 = pneg %p355
      %p362 = scmp.eq.s32.totalorder %s22, 3
      %p363 = por %p361, %p362
      %p364 = scmp.ne.s32.totalorder %s356, %s359
      %p365 = scmp.eq.s32.totalorder %s22, 0
      %p366 = por %p364, %p365
      %p367 = scmp.ne.s32.totalorder %s356, %s359
      %p368 = scmp.eq.s32.totalorder %s27, 3
      %p369 = por %p367, %p368
      %p370 = scmp.ne.s32.totalorder %s359, %s360
      %p371 = scmp.eq.s32.totalorder %s27, 0
      %p372 = por %p370, %p371
      %p373 = scmp.ne.s32.totalorder %s359, %s360
      %p374 = scmp.eq.s32.totalorder %s28, 3
      %p375 = por %p373, %p374
      %p377 = scmp.ne.s32.totalorder %s360, %s376
      %p378 = scmp.eq.s32.totalorder %s28, 0
      %p379 = por %p377, %p378
      %s380 = ssub.s32 %s29, %s41
      %p381 = scmp.eq.s32.totalorder %s380, 0
      %s383 = sadd.s32 %s382, 1
      %s384 = scalar_select %p381, %s382, %s383
      %p387 = pneg %p381
      %p388 = scmp.eq.s32.totalorder %s22, 3
      %p389 = por %p387, %p388
      %p390 = scmp.ne.s32.totalorder %s382, %s385
      %p391 = scmp.eq.s32.totalorder %s22, 0
      %p392 = por %p390, %p391
      %p393 = scmp.ne.s32.totalorder %s382, %s385
      %p394 = scmp.eq.s32.totalorder %s27, 3
      %p395 = por %p393, %p394
      %p396 = scmp.ne.s32.totalorder %s385, %s386
      %p397 = scmp.eq.s32.totalorder %s27, 0
      %p398 = por %p396, %p397
      %p399 = scmp.ne.s32.totalorder %s385, %s386
      %p400 = scmp.eq.s32.totalorder %s28, 3
      %p401 = por %p399, %p400
      %p403 = scmp.ne.s32.totalorder %s386, %s402
      %p404 = scmp.eq.s32.totalorder %s28, 0
      %p405 = por %p403, %p404
      %p406 = scmp.le.s32.totalorder 1, %s22
      %p407 = scmp.lt.s32.totalorder %s22, 5
      %p408 = pnand %p406, %p407
      %p409 = pneg %p408
      // Predicated region
      $region9: #{tpu_custom_call.1} parent=5 // pred_check
        _
      $region10: #{tpu_custom_call.1} parent=5 // pred_check_branch
        %411 = sbr.rel (%p408) target = $region12
      $region11: #{tpu_custom_call.1} parent=5 // pred_region
        %s412 = ssub.s32 %s22, 1
      $region12: #{tpu_custom_call.1} parent=5 // pred_fallthru
        _
      %p413 = scmp.lt.s32.totalorder %s22, 4
      // Predicated region
      $region13: #{tpu_custom_call.1} parent=5 // pred_check
        %p414 = pneg %p413
      $region14: #{tpu_custom_call.1} parent=5 // pred_check_branch
        %416 = sbr.rel (%p414) target = $region16
      $region15: #{tpu_custom_call.1} parent=5 // pred_region
        // Predicated region
        $region17: #{tpu_custom_call.1} parent=15 // pred_check
          %p417 = pneg %p54
        $region18: #{tpu_custom_call.1} parent=15 // pred_check_branch
          %419 = sbr.rel (%p417) target = $region20
        $region19: #{tpu_custom_call.1} parent=15 // pred_region
          %p420 = scmp.lt.s32.totalorder %s29, 1
          %s421 = scalar_select %p420, %s29, 1
          %s422 = smul.addr %s421, 8
          %s423 = scalar_lea.vmem %s0, %s422
        $region20: #{tpu_custom_call.1} parent=15 // pred_fallthru
          _
        // Predicated region
        $region21: #{tpu_custom_call.1} parent=15 // pred_check
          %p424 = pneg %p80
        $region22: #{tpu_custom_call.1} parent=15 // pred_check_branch
          %426 = sbr.rel (%p424) target = $region24
        $region23: #{tpu_custom_call.1} parent=15 // pred_region
          %p427 = scmp.lt.s32.totalorder %s30, 1
          %s428 = scalar_select %p427, %s30, 1
          %s429 = smul.addr %s428, 4
          %s430 = smul.addr %s429, 4
          %s431 = scalar_lea.vmem %s1, %s430
        $region24: #{tpu_custom_call.1} parent=15 // pred_fallthru
          _
        // Predicated region
        $region25: #{tpu_custom_call.1} parent=15 // pred_check
          %p432 = pneg %p106
        $region26: #{tpu_custom_call.1} parent=15 // pred_check_branch
          %434 = sbr.rel (%p432) target = $region28
        $region27: #{tpu_custom_call.1} parent=15 // pred_region
          %p435 = scmp.lt.s32.totalorder %s30, 1
          %s436 = scalar_select %p435, %s30, 1
          %s437 = scalar_lea.vmem %s2, %s436
        $region28: #{tpu_custom_call.1} parent=15 // pred_fallthru
          _
        // Predicated region
        $region29: #{tpu_custom_call.1} parent=15 // pred_check
          %p438 = pneg %p132
        $region30: #{tpu_custom_call.1} parent=15 // pred_check_branch
          %440 = sbr.rel (%p438) target = $region32
        $region31: #{tpu_custom_call.1} parent=15 // pred_region
          %p441 = scmp.lt.s32.totalorder %s30, 1
          %s442 = scalar_select %p441, %s30, 1
          %s443 = smul.addr %s442, 4
          %s444 = smul.addr %s443, 4
          %s445 = scalar_lea.vmem %s3, %s444
        $region32: #{tpu_custom_call.1} parent=15 // pred_fallthru
          _
        // Predicated region
        $region33: #{tpu_custom_call.1} parent=15 // pred_check
          %p446 = pneg %p158
        $region34: #{tpu_custom_call.1} parent=15 // pred_check_branch
          %448 = sbr.rel (%p446) target = $region36
        $region35: #{tpu_custom_call.1} parent=15 // pred_region
          %p449 = scmp.lt.s32.totalorder %s30, 1
          %s450 = scalar_select %p449, %s30, 1
          %s451 = scalar_lea.vmem %s4, %s450
        $region36: #{tpu_custom_call.1} parent=15 // pred_fallthru
          _
        // Predicated region
        $region37: #{tpu_custom_call.1} parent=15 // pred_check
          %p452 = pneg %p184
        $region38: #{tpu_custom_call.1} parent=15 // pred_check_branch
          %454 = sbr.rel (%p452) target = $region40
        $region39: #{tpu_custom_call.1} parent=15 // pred_region
          %p455 = scmp.lt.s32.totalorder %s30, 1
          %s456 = scalar_select %p455, %s30, 1
          %s457 = scalar_lea.vmem %s5, %s456
        $region40: #{tpu_custom_call.1} parent=15 // pred_fallthru
          _
        // Predicated region
        $region41: #{tpu_custom_call.1} parent=15 // pred_check
          %p458 = pneg %p210
        $region42: #{tpu_custom_call.1} parent=15 // pred_check_branch
          %460 = sbr.rel (%p458) target = $region44
        $region43: #{tpu_custom_call.1} parent=15 // pred_region
          %p461 = scmp.lt.s32.totalorder %s30, 1
          %s462 = scalar_select %p461, %s30, 1
          %s463 = scalar_lea.vmem %s6, %s462
        $region44: #{tpu_custom_call.1} parent=15 // pred_fallthru
          _
        // Predicated region
        $region45: #{tpu_custom_call.1} parent=15 // pred_check
          %p464 = pneg %p236
        $region46: #{tpu_custom_call.1} parent=15 // pred_check_branch
          %466 = sbr.rel (%p464) target = $region48
        $region47: #{tpu_custom_call.1} parent=15 // pred_region
          %p467 = scmp.lt.s32.totalorder %s30, 1
          %s468 = scalar_select %p467, %s30, 1
          %s469 = smul.addr %s468, 4
          %s470 = smul.addr %s469, 4
          %s471 = scalar_lea.vmem %s7, %s470
        $region48: #{tpu_custom_call.1} parent=15 // pred_fallthru
          _
        // Predicated region
        $region49: #{tpu_custom_call.1} parent=15 // pred_check
          %p472 = pneg %p262
        $region50: #{tpu_custom_call.1} parent=15 // pred_check_branch
          %474 = sbr.rel (%p472) target = $region52
        $region51: #{tpu_custom_call.1} parent=15 // pred_region
          %p475 = scmp.lt.s32.totalorder %s30, 1
          %s476 = scalar_select %p475, %s30, 1
          %s477 = scalar_lea.vmem %s8, %s476
        $region52: #{tpu_custom_call.1} parent=15 // pred_fallthru
          _
        // Predicated region
        $region53: #{tpu_custom_call.1} parent=15 // pred_check
          %p478 = pneg %p288
        $region54: #{tpu_custom_call.1} parent=15 // pred_check_branch
          %480 = sbr.rel (%p478) target = $region56
        $region55: #{tpu_custom_call.1} parent=15 // pred_region
          %p481 = scmp.lt.s32.totalorder %s30, 1
          %s482 = scalar_select %p481, %s30, 1
          %s483 = smul.addr %s482, 16
          %s484 = smul.addr %s483, 4
          %s485 = scalar_lea.vmem %s9, %s484
        $region56: #{tpu_custom_call.1} parent=15 // pred_fallthru
          _
        // Predicated region
        $region57: #{tpu_custom_call.1} parent=15 // pred_check
          %p486 = pneg %p314
        $region58: #{tpu_custom_call.1} parent=15 // pred_check_branch
          %488 = sbr.rel (%p486) target = $region60
        $region59: #{tpu_custom_call.1} parent=15 // pred_region
          %p489 = scmp.lt.s32.totalorder %s30, 1
          %s490 = scalar_select %p489, %s30, 1
          %s491 = scalar_lea.vmem %s10, %s490
        $region60: #{tpu_custom_call.1} parent=15 // pred_fallthru
          _
        // Predicated region
        $region61: #{tpu_custom_call.1} parent=15 // pred_check
          %p492 = pneg %p340
        $region62: #{tpu_custom_call.1} parent=15 // pred_check_branch
          %494 = sbr.rel (%p492) target = $region64
        $region63: #{tpu_custom_call.1} parent=15 // pred_region
          %p495 = scmp.lt.s32.totalorder %s30, 1
          %s496 = scalar_select %p495, %s30, 1
          %s497 = scalar_lea.vmem %s11, %s496
        $region64: #{tpu_custom_call.1} parent=15 // pred_fallthru
          _
        // Predicated region
        $region65: #{tpu_custom_call.1} parent=15 // pred_check
          %p498 = pneg %p366
        $region66: #{tpu_custom_call.1} parent=15 // pred_check_branch
          %500 = sbr.rel (%p498) target = $region68
        $region67: #{tpu_custom_call.1} parent=15 // pred_region
          %p501 = scmp.lt.s32.totalorder %s30, 1
          %s502 = scalar_select %p501, %s30, 1
          %s503 = scalar_lea.vmem %s12, %s502
        $region68: #{tpu_custom_call.1} parent=15 // pred_fallthru
          _
      $region16: #{tpu_custom_call.1} parent=5 // pred_fallthru
        _
      %p504 = scmp.le.s32.totalorder 1, %s22
      %p505 = scmp.lt.s32.totalorder %s22, 5
      %p506 = pnand %p504, %p505
      %p507 = pneg %p506
      // Predicated region
      $region69: #{tpu_custom_call.1} parent=5 // pred_check
        _
      $region70: #{tpu_custom_call.1} parent=5 // pred_check_branch
        %509 = sbr.rel (%p506) target = $region72
      $region71: #{tpu_custom_call.1} parent=5 // pred_region
        %s510 = ssub.s32 %s22, 1
        %p511 = scmp.lt.s32.totalorder %s31, 1
        %s512 = scalar_select %p511, %s31, 1
        %s513 = smul.addr %s512, 8
        %s514 = scalar_lea.vmem %s0, %s513
        %p515 = pneg %p60
        %p516 = pneg %p57
        %p517 = scmp.lt.s32.totalorder %s32, 1
        %s518 = scalar_select %p517, %s32, 1
        %s519 = smul.addr %s518, 4
        %s520 = smul.addr %s519, 4
        %s521 = scalar_lea.vmem %s1, %s520
        %p522 = pneg %p86
        %p523 = pneg %p83
        %p524 = scmp.lt.s32.totalorder %s32, 1
        %s525 = scalar_select %p524, %s32, 1
        %s526 = scalar_lea.vmem %s2, %s525
        %p527 = pneg %p112
        %p528 = pneg %p109
        %p529 = scmp.lt.s32.totalorder %s32, 1
        %s530 = scalar_select %p529, %s32, 1
        %s531 = smul.addr %s530, 4
        %s532 = smul.addr %s531, 4
        %s533 = scalar_lea.vmem %s3, %s532
        %p534 = pneg %p138
        %p535 = pneg %p135
        %p536 = scmp.lt.s32.totalorder %s32, 1
        %s537 = scalar_select %p536, %s32, 1
        %s538 = scalar_lea.vmem %s4, %s537
        %p539 = pneg %p164
        %p540 = pneg %p161
        %p541 = scmp.lt.s32.totalorder %s32, 1
        %s542 = scalar_select %p541, %s32, 1
        %s543 = scalar_lea.vmem %s5, %s542
        %p544 = pneg %p190
        %p545 = pneg %p187
        %p546 = scmp.lt.s32.totalorder %s32, 1
        %s547 = scalar_select %p546, %s32, 1
        %s548 = scalar_lea.vmem %s6, %s547
        %p549 = pneg %p216
        %p550 = pneg %p213
        %p551 = scmp.lt.s32.totalorder %s32, 1
        %s552 = scalar_select %p551, %s32, 1
        %s553 = smul.addr %s552, 4
        %s554 = smul.addr %s553, 4
        %s555 = scalar_lea.vmem %s7, %s554
        %p556 = pneg %p242
        %p557 = pneg %p239
        %p558 = scmp.lt.s32.totalorder %s32, 1
        %s559 = scalar_select %p558, %s32, 1
        %s560 = scalar_lea.vmem %s8, %s559
        %p561 = pneg %p268
        %p562 = pneg %p265
        %p563 = scmp.lt.s32.totalorder %s32, 1
        %s564 = scalar_select %p563, %s32, 1
        %s565 = smul.addr %s564, 16
        %s566 = smul.addr %s565, 4
        %s567 = scalar_lea.vmem %s9, %s566
        %p568 = pneg %p294
        %p569 = pneg %p291
        %p570 = scmp.lt.s32.totalorder %s32, 1
        %s571 = scalar_select %p570, %s32, 1
        %s572 = scalar_lea.vmem %s10, %s571
        %p573 = pneg %p320
        %p574 = pneg %p317
        %p575 = scmp.lt.s32.totalorder %s32, 1
        %s576 = scalar_select %p575, %s32, 1
        %s577 = scalar_lea.vmem %s11, %s576
        %p578 = pneg %p346
        %p579 = pneg %p343
        %p580 = scmp.lt.s32.totalorder %s32, 1
        %s581 = scalar_select %p580, %s32, 1
        %s582 = scalar_lea.vmem %s12, %s581
        %p583 = pneg %p372
        %p584 = pneg %p369
        %p585 = pneg %p398
        %p586 = pneg %p395
        %s587 = sand.u32 %s385, 1
        %s588 = scalar_lea.sflag [#allocation3], %s587
        %s589 = sand.u32 %s385, 1
        %s590 = smul.addr %s589, 8
        %s591 = scalar_lea.vmem [#allocation2], %s590
        %p592 = scmp.lt.s32.totalorder %s31, 1
        %s593 = scalar_select %p592, %s31, 1
        %s594 = smul.addr %s593, 8
        %s595 = scalar_lea.vmem %s0, %s594
        %p596 = scmp.lt.s32.totalorder %s32, 1
        %s597 = scalar_select %p596, %s32, 1
        %s598 = smul.addr %s597, 4
        %s599 = smul.addr %s598, 4
        %s600 = scalar_lea.vmem %s1, %s599
        %p601 = scmp.lt.s32.totalorder %s32, 1
        %s602 = scalar_select %p601, %s32, 1
        %s603 = scalar_lea.vmem %s2, %s602
        %p604 = scmp.lt.s32.totalorder %s32, 1
        %s605 = scalar_select %p604, %s32, 1
        %s606 = smul.addr %s605, 4
        %s607 = smul.addr %s606, 4
        %s608 = scalar_lea.vmem %s3, %s607
        %p609 = scmp.lt.s32.totalorder %s32, 1
        %s610 = scalar_select %p609, %s32, 1
        %s611 = scalar_lea.vmem %s4, %s610
        %p612 = scmp.lt.s32.totalorder %s32, 1
        %s613 = scalar_select %p612, %s32, 1
        %s614 = scalar_lea.vmem %s5, %s613
        %p615 = scmp.lt.s32.totalorder %s32, 1
        %s616 = scalar_select %p615, %s32, 1
        %s617 = scalar_lea.vmem %s6, %s616
        %p618 = scmp.lt.s32.totalorder %s32, 1
        %s619 = scalar_select %p618, %s32, 1
        %s620 = smul.addr %s619, 4
        %s621 = smul.addr %s620, 4
        %s622 = scalar_lea.vmem %s7, %s621
        %p623 = scmp.lt.s32.totalorder %s32, 1
        %s624 = scalar_select %p623, %s32, 1
        %s625 = scalar_lea.vmem %s8, %s624
        %p626 = scmp.lt.s32.totalorder %s32, 1
        %s627 = scalar_select %p626, %s32, 1
        %s628 = smul.addr %s627, 16
        %s629 = smul.addr %s628, 4
        %s630 = scalar_lea.vmem %s9, %s629
        %p631 = scmp.lt.s32.totalorder %s32, 1
        %s632 = scalar_select %p631, %s32, 1
        %s633 = scalar_lea.vmem %s10, %s632
        %p634 = scmp.lt.s32.totalorder %s32, 1
        %s635 = scalar_select %p634, %s32, 1
        %s636 = scalar_lea.vmem %s11, %s635
        %p637 = scmp.lt.s32.totalorder %s32, 1
        %s638 = scalar_select %p637, %s32, 1
        %s639 = scalar_lea.vmem %s12, %s638
        %p641 = scmp.eq.s32.totalorder %s32, 0
        // Predicated region
        $region73: #{tpu_custom_call.1} parent=71 // pred_check
          %p642 = pneg %p641
        $region74: #{tpu_custom_call.1} parent=71 // pred_check_branch
          %644 = sbr.rel (%p642) target = $region76
        $region75: #{tpu_custom_call.1} parent=71 // pred_region
          %v645 = vld [vmem:[%s595] sm:$0xff]
          %vm646 = vcmask 261120
          %647 = vst.msk [vmem:[%s591] sm:$0xff] %vm646, %v645
        $region76: #{tpu_custom_call.1} parent=71 // pred_fallthru
          _
        %v648 = vld [vmem:[%s591] sm:$0xff]
        %v649 = vpack.c.bf16 %v648, %v648
        %v650 = vld [vmem:[%s600] sm:$0xf]
        %v651 = vld [vmem:[%s600 + $0x4] sm:$0xf]
        %v652 = vld [vmem:[%s600 + $0x8] sm:$0xf]
        %v653 = vld [vmem:[%s600 + $0xc] sm:$0xf]
        %v654 = vld [vmem:[%s603] sm:$0x1]
        %v656 = vlaneseq
        %v657 = vshrl.u32 %v656, 7
        %v658 = vsub.s32 0, %v657
        %v659 = vrot.slane %v654, %v658
        %v665 = vunpack.c.l.b16 %v650
        %v666 = vunpack.c.l.b16 %v651
        %v667 = vunpack.c.l.b16 %v652
        %v668 = vunpack.c.l.b16 %v653
        %v669 = vpack.c.b16 %v666, %v665
        %v670 = vpack.c.b16 %v668, %v667
        %vm673 = vcmask 261120
        %v675 = vsel %vm673, %v649, 0
        %677 = vmatprep.subr.bf16.mxu0 0
        %678 = vmatpush1.bf16.msra.mxu0 %v669
        %679 = vmatprep.subr.bf16.mxu0 0
        %680 = vmatpush1.bf16.msra.mxu0 %v670
        %681 = vmatprep.subr.bf16.mxu0 0
        %682 = vmatpush1.bf16.msra.mxu0 0
        %683 = vmatprep.subr.bf16.mxu0 0
        %684 = vmatpush1.bf16.msra.mxu0 0
        %685 = vmatprep.subr.bf16.mxu0 0
        %686 = vmatpush1.bf16.msra.mxu0 0
        %687 = vmatprep.subr.bf16.mxu0 0
        %688 = vmatpush1.bf16.msra.mxu0 0
        %689 = vmatprep.subr.bf16.mxu0 0
        %690 = vmatpush1.bf16.msra.mxu0 0
        %691 = vmatprep.subr.bf16.mxu0 0
        %692 = vmatpush1.bf16.msra.mxu0 0
        %693 = vmatprep.subr.bf16.mxu0 0
        %694 = vmatpush1.bf16.msra.mxu0 0
        %695 = vmatprep.subr.bf16.mxu0 0
        %696 = vmatpush1.bf16.msra.mxu0 0
        %697 = vmatprep.subr.bf16.mxu0 0
        %698 = vmatpush1.bf16.msra.mxu0 0
        %699 = vmatprep.subr.bf16.mxu0 0
        %700 = vmatpush1.bf16.msra.mxu0 0
        %701 = vmatprep.subr.bf16.mxu0 0
        %702 = vmatpush1.bf16.msra.mxu0 0
        %703 = vmatprep.subr.bf16.mxu0 0
        %704 = vmatpush1.bf16.msra.mxu0 0
        %705 = vmatprep.subr.bf16.mxu0 0
        %706 = vmatpush1.bf16.msra.mxu0 0
        %707 = vmatprep.subr.bf16.mxu0 0
        %708 = vmatpush1.bf16.msra.mxu0 0
        %709 = vmatprep.mubr.bf16.mxu0 0
        %710 = vmatmul.mubr.bf16.gmra.mrb[0].mxu0 %v675
        %v711 = vpop.f32.mrb[0].mxu0
        %v712 = vadd.f32 %v659, %v711
        %v713 = vpop.f32.mrb[0].mxu0
        %v714 = vpop.f32.mrb[0].mxu0
        %v715 = vpop.f32.mrb[0].mxu0
        %716 = vdwg.mxu0
        %718 = vrot.lane.b32.xlu0 %v712, 120
        %v719 = vpop.permute.xlu0 %718
        %721 = vrot.lane.b32.xlu0 %v712, 112
        %v722 = vpop.permute.xlu0 %721
        %724 = vrot.lane.b32.xlu0 %v712, 104
        %v725 = vpop.permute.xlu0 %724
        %v727 = vcombine.low %v712, %v722
        %v728 = vcombine.high %v712, %v722
        %v730 = vunpack.c.l.s4 1983009808
        %v731 = vunpack.c.0.s8 %v730
        %v732 = vlaneseq
        %v733 = vshrl.u32 %v732, 7
        %v734 = vsub.s32 %v731, %v733
        %v735 = vrot.slane %v727, %v734
        %v737 = vunpack.c.l.s4 1983009808
        %v738 = vunpack.c.0.s8 %v737
        %v739 = vlaneseq
        %v740 = vshrl.u32 %v739, 7
        %v741 = vsub.s32 %v738, %v740
        %v742 = vrot.slane %v728, %v741
        %v743 = vcombine.low %v719, %v725
        %v744 = vcombine.high %v719, %v725
        %v746 = vunpack.c.l.s4 1983009808
        %v747 = vunpack.c.0.s8 %v746
        %v748 = vlaneseq
        %v749 = vshrl.u32 %v748, 7
        %v750 = vsub.s32 %v747, %v749
        %v751 = vrot.slane %v743, %v750
        %v753 = vunpack.c.l.s4 1983009808
        %v754 = vunpack.c.0.s8 %v753
        %v755 = vlaneseq
        %v756 = vshrl.u32 %v755, 7
        %v757 = vsub.s32 %v754, %v756
        %v758 = vrot.slane %v744, %v757
        %v759 = vcombine.low %v735, %v751
        %v760 = vcombine.high %v735, %v751
        %v762 = vunpack.c.l.s4 1934713408
        %v763 = vunpack.c.0.s8 %v762
        %v764 = vlaneseq
        %v765 = vshrl.u32 %v764, 7
        %v766 = vsub.s32 %v763, %v765
        %v767 = vrot.slane %v759, %v766
        %v769 = vunpack.c.l.s4 1934713408
        %v770 = vunpack.c.0.s8 %v769
        %v771 = vlaneseq
        %v772 = vshrl.u32 %v771, 7
        %v773 = vsub.s32 %v770, %v772
        %v774 = vrot.slane %v760, %v773
        %v775 = vcombine.low %v742, %v758
        %v776 = vcombine.high %v742, %v758
        %v778 = vunpack.c.l.s4 1934713408
        %v779 = vunpack.c.0.s8 %v778
        %v780 = vlaneseq
        %v781 = vshrl.u32 %v780, 7
        %v782 = vsub.s32 %v779, %v781
        %v783 = vrot.slane %v775, %v782
        %v785 = vunpack.c.l.s4 1934713408
        %v786 = vunpack.c.0.s8 %v785
        %v787 = vlaneseq
        %v788 = vshrl.u32 %v787, 7
        %v789 = vsub.s32 %v786, %v788
        %v790 = vrot.slane %v776, %v789
        %v791 = vcombine.high %v767, 0.0
        %v792 = vcombine.high %v774, 0.0
        %v793 = vcombine.high %v783, 0.0
        %v794 = vcombine.high %v790, 0.0
        %v795 = vcombine.low %v767, %v774
        %v797 = vunpack.c.l.s4 1983009808
        %v798 = vunpack.c.0.s8 %v797
        %v799 = vlaneseq
        %v800 = vshrl.u32 %v799, 7
        %v801 = vsub.s32 %v798, %v800
        %v802 = vrot.slane %v795, %v801
        %v803 = vcombine.low %v791, %v792
        %v805 = vunpack.c.l.s4 1983009808
        %v806 = vunpack.c.0.s8 %v805
        %v807 = vlaneseq
        %v808 = vshrl.u32 %v807, 7
        %v809 = vsub.s32 %v806, %v808
        %v810 = vrot.slane %v803, %v809
        %v811 = vcombine.low %v783, %v790
        %v813 = vunpack.c.l.s4 1983009808
        %v814 = vunpack.c.0.s8 %v813
        %v815 = vlaneseq
        %v816 = vshrl.u32 %v815, 7
        %v817 = vsub.s32 %v814, %v816
        %v818 = vrot.slane %v811, %v817
        %v819 = vcombine.low %v793, %v794
        %v821 = vunpack.c.l.s4 1983009808
        %v822 = vunpack.c.0.s8 %v821
        %v823 = vlaneseq
        %v824 = vshrl.u32 %v823, 7
        %v825 = vsub.s32 %v822, %v824
        %v826 = vrot.slane %v819, %v825
        %v827 = vcombine.low %v802, %v810
        %v828 = vcombine.high %v802, %v810
        %v830 = vunpack.c.l.s4 1934713408
        %v831 = vunpack.c.0.s8 %v830
        %v832 = vlaneseq
        %v833 = vshrl.u32 %v832, 7
        %v834 = vsub.s32 %v831, %v833
        %v835 = vrot.slane %v827, %v834
        %v837 = vunpack.c.l.s4 1934713408
        %v838 = vunpack.c.0.s8 %v837
        %v839 = vlaneseq
        %v840 = vshrl.u32 %v839, 7
        %v841 = vsub.s32 %v838, %v840
        %v842 = vrot.slane %v828, %v841
        %v843 = vcombine.low %v818, %v826
        %v844 = vcombine.high %v818, %v826
        %v846 = vunpack.c.l.s4 1934713408
        %v847 = vunpack.c.0.s8 %v846
        %v848 = vlaneseq
        %v849 = vshrl.u32 %v848, 7
        %v850 = vsub.s32 %v847, %v849
        %v851 = vrot.slane %v843, %v850
        %v853 = vunpack.c.l.s4 1934713408
        %v854 = vunpack.c.0.s8 %v853
        %v855 = vlaneseq
        %v856 = vshrl.u32 %v855, 7
        %v857 = vsub.s32 %v854, %v856
        %v858 = vrot.slane %v844, %v857
        %v859 = vcombine.low %v835, %v851
        %v860 = vcombine.high %v835, %v851
        %v861 = vcombine.low %v842, %v858
        %v862 = vcombine.high %v842, %v858
        %v863 = vpack.c.bf16 %v859, %v859
        %v864 = vpack.c.bf16 %v860, %v860
        %v865 = vpack.c.bf16 %v861, %v861
        %v866 = vpack.c.bf16 %v862, %v862
        %867 = vrot.lane.b32.xlu0 %v712, 96
        %v868 = vpop.permute.xlu0 %867
        %869 = vrot.lane.b32.xlu0 %v719, 96
        %v870 = vpop.permute.xlu0 %869
        %871 = vrot.lane.b32.xlu0 %v722, 96
        %v872 = vpop.permute.xlu0 %871
        %873 = vrot.lane.b32.xlu0 %v725, 96
        %v874 = vpop.permute.xlu0 %873
        %v879 = vcombine.low %v868, %v872
        %v880 = vcombine.high %v868, %v872
        %v882 = vunpack.c.l.s4 1983009808
        %v883 = vunpack.c.0.s8 %v882
        %v884 = vlaneseq
        %v885 = vshrl.u32 %v884, 7
        %v886 = vsub.s32 %v883, %v885
        %v887 = vrot.slane %v879, %v886
        %v889 = vunpack.c.l.s4 1983009808
        %v890 = vunpack.c.0.s8 %v889
        %v891 = vlaneseq
        %v892 = vshrl.u32 %v891, 7
        %v893 = vsub.s32 %v890, %v892
        %v894 = vrot.slane %v880, %v893
        %v895 = vcombine.low %v870, %v874
        %v896 = vcombine.high %v870, %v874
        %v898 = vunpack.c.l.s4 1983009808
        %v899 = vunpack.c.0.s8 %v898
        %v900 = vlaneseq
        %v901 = vshrl.u32 %v900, 7
        %v902 = vsub.s32 %v899, %v901
        %v903 = vrot.slane %v895, %v902
        %v905 = vunpack.c.l.s4 1983009808
        %v906 = vunpack.c.0.s8 %v905
        %v907 = vlaneseq
        %v908 = vshrl.u32 %v907, 7
        %v909 = vsub.s32 %v906, %v908
        %v910 = vrot.slane %v896, %v909
        %v911 = vcombine.low %v887, %v903
        %v912 = vcombine.high %v887, %v903
        %v914 = vunpack.c.l.s4 1934713408
        %v915 = vunpack.c.0.s8 %v914
        %v916 = vlaneseq
        %v917 = vshrl.u32 %v916, 7
        %v918 = vsub.s32 %v915, %v917
        %v919 = vrot.slane %v911, %v918
        %v921 = vunpack.c.l.s4 1934713408
        %v922 = vunpack.c.0.s8 %v921
        %v923 = vlaneseq
        %v924 = vshrl.u32 %v923, 7
        %v925 = vsub.s32 %v922, %v924
        %v926 = vrot.slane %v912, %v925
        %v927 = vcombine.low %v894, %v910
        %v928 = vcombine.high %v894, %v910
        %v930 = vunpack.c.l.s4 1934713408
        %v931 = vunpack.c.0.s8 %v930
        %v932 = vlaneseq
        %v933 = vshrl.u32 %v932, 7
        %v934 = vsub.s32 %v931, %v933
        %v935 = vrot.slane %v927, %v934
        %v937 = vunpack.c.l.s4 1934713408
        %v938 = vunpack.c.0.s8 %v937
        %v939 = vlaneseq
        %v940 = vshrl.u32 %v939, 7
        %v941 = vsub.s32 %v938, %v940
        %v942 = vrot.slane %v928, %v941
        %v943 = vcombine.high %v919, 0.0
        %v944 = vcombine.high %v926, 0.0
        %v945 = vcombine.high %v935, 0.0
        %v946 = vcombine.high %v942, 0.0
        %v947 = vcombine.low %v919, %v926
        %v949 = vunpack.c.l.s4 1983009808
        %v950 = vunpack.c.0.s8 %v949
        %v951 = vlaneseq
        %v952 = vshrl.u32 %v951, 7
        %v953 = vsub.s32 %v950, %v952
        %v954 = vrot.slane %v947, %v953
        %v955 = vcombine.low %v943, %v944
        %v957 = vunpack.c.l.s4 1983009808
        %v958 = vunpack.c.0.s8 %v957
        %v959 = vlaneseq
        %v960 = vshrl.u32 %v959, 7
        %v961 = vsub.s32 %v958, %v960
        %v962 = vrot.slane %v955, %v961
        %v963 = vcombine.low %v935, %v942
        %v965 = vunpack.c.l.s4 1983009808
        %v966 = vunpack.c.0.s8 %v965
        %v967 = vlaneseq
        %v968 = vshrl.u32 %v967, 7
        %v969 = vsub.s32 %v966, %v968
        %v970 = vrot.slane %v963, %v969
        %v971 = vcombine.low %v945, %v946
        %v973 = vunpack.c.l.s4 1983009808
        %v974 = vunpack.c.0.s8 %v973
        %v975 = vlaneseq
        %v976 = vshrl.u32 %v975, 7
        %v977 = vsub.s32 %v974, %v976
        %v978 = vrot.slane %v971, %v977
        %v979 = vcombine.low %v954, %v962
        %v980 = vcombine.high %v954, %v962
        %v982 = vunpack.c.l.s4 1934713408
        %v983 = vunpack.c.0.s8 %v982
        %v984 = vlaneseq
        %v985 = vshrl.u32 %v984, 7
        %v986 = vsub.s32 %v983, %v985
        %v987 = vrot.slane %v979, %v986
        %v989 = vunpack.c.l.s4 1934713408
        %v990 = vunpack.c.0.s8 %v989
        %v991 = vlaneseq
        %v992 = vshrl.u32 %v991, 7
        %v993 = vsub.s32 %v990, %v992
        %v994 = vrot.slane %v980, %v993
        %v995 = vcombine.low %v970, %v978
        %v996 = vcombine.high %v970, %v978
        %v998 = vunpack.c.l.s4 1934713408
        %v999 = vunpack.c.0.s8 %v998
        %v1000 = vlaneseq
        %v1001 = vshrl.u32 %v1000, 7
        %v1002 = vsub.s32 %v999, %v1001
        %v1003 = vrot.slane %v995, %v1002
        %v1005 = vunpack.c.l.s4 1934713408
        %v1006 = vunpack.c.0.s8 %v1005
        %v1007 = vlaneseq
        %v1008 = vshrl.u32 %v1007, 7
        %v1009 = vsub.s32 %v1006, %v1008
        %v1010 = vrot.slane %v996, %v1009
        %v1011 = vcombine.low %v987, %v1003
        %v1012 = vcombine.high %v987, %v1003
        %v1013 = vcombine.low %v994, %v1010
        %v1014 = vcombine.high %v994, %v1010
        %v1015 = vpack.c.bf16 %v1011, %v1011
        %v1016 = vpack.c.bf16 %v1012, %v1012
        %v1017 = vpack.c.bf16 %v1013, %v1013
        %v1018 = vpack.c.bf16 %v1014, %v1014
        %1019 = vrot.lane.b32.xlu0 %v712, 64
        %v1020 = vpop.permute.xlu0 %1019
        %1021 = vrot.lane.b32.xlu0 %v719, 64
        %v1022 = vpop.permute.xlu0 %1021
        %1023 = vrot.lane.b32.xlu0 %v722, 64
        %v1024 = vpop.permute.xlu0 %1023
        %1025 = vrot.lane.b32.xlu0 %v725, 64
        %v1026 = vpop.permute.xlu0 %1025
        %v1031 = vcombine.low %v1020, %v1024
        %v1032 = vcombine.high %v1020, %v1024
        %v1034 = vunpack.c.l.s4 1983009808
        %v1035 = vunpack.c.0.s8 %v1034
        %v1036 = vlaneseq
        %v1037 = vshrl.u32 %v1036, 7
        %v1038 = vsub.s32 %v1035, %v1037
        %v1039 = vrot.slane %v1031, %v1038
        %v1041 = vunpack.c.l.s4 1983009808
        %v1042 = vunpack.c.0.s8 %v1041
        %v1043 = vlaneseq
        %v1044 = vshrl.u32 %v1043, 7
        %v1045 = vsub.s32 %v1042, %v1044
        %v1046 = vrot.slane %v1032, %v1045
        %v1047 = vcombine.low %v1022, %v1026
        %v1048 = vcombine.high %v1022, %v1026
        %v1050 = vunpack.c.l.s4 1983009808
        %v1051 = vunpack.c.0.s8 %v1050
        %v1052 = vlaneseq
        %v1053 = vshrl.u32 %v1052, 7
        %v1054 = vsub.s32 %v1051, %v1053
        %v1055 = vrot.slane %v1047, %v1054
        %v1057 = vunpack.c.l.s4 1983009808
        %v1058 = vunpack.c.0.s8 %v1057
        %v1059 = vlaneseq
        %v1060 = vshrl.u32 %v1059, 7
        %v1061 = vsub.s32 %v1058, %v1060
        %v1062 = vrot.slane %v1048, %v1061
        %v1063 = vcombine.low %v1039, %v1055
        %v1064 = vcombine.high %v1039, %v1055
        %v1066 = vunpack.c.l.s4 1934713408
        %v1067 = vunpack.c.0.s8 %v1066
        %v1068 = vlaneseq
        %v1069 = vshrl.u32 %v1068, 7
        %v1070 = vsub.s32 %v1067, %v1069
        %v1071 = vrot.slane %v1063, %v1070
        %v1073 = vunpack.c.l.s4 1934713408
        %v1074 = vunpack.c.0.s8 %v1073
        %v1075 = vlaneseq
        %v1076 = vshrl.u32 %v1075, 7
        %v1077 = vsub.s32 %v1074, %v1076
        %v1078 = vrot.slane %v1064, %v1077
        %v1079 = vcombine.low %v1046, %v1062
        %v1080 = vcombine.high %v1046, %v1062
        %v1082 = vunpack.c.l.s4 1934713408
        %v1083 = vunpack.c.0.s8 %v1082
        %v1084 = vlaneseq
        %v1085 = vshrl.u32 %v1084, 7
        %v1086 = vsub.s32 %v1083, %v1085
        %v1087 = vrot.slane %v1079, %v1086
        %v1089 = vunpack.c.l.s4 1934713408
        %v1090 = vunpack.c.0.s8 %v1089
        %v1091 = vlaneseq
        %v1092 = vshrl.u32 %v1091, 7
        %v1093 = vsub.s32 %v1090, %v1092
        %v1094 = vrot.slane %v1080, %v1093
        %v1095 = vcombine.high %v1071, 0.0
        %v1096 = vcombine.high %v1078, 0.0
        %v1097 = vcombine.high %v1087, 0.0
        %v1098 = vcombine.high %v1094, 0.0
        %v1099 = vcombine.low %v1071, %v1078
        %v1101 = vunpack.c.l.s4 1983009808
        %v1102 = vunpack.c.0.s8 %v1101
        %v1103 = vlaneseq
        %v1104 = vshrl.u32 %v1103, 7
        %v1105 = vsub.s32 %v1102, %v1104
        %v1106 = vrot.slane %v1099, %v1105
        %v1107 = vcombine.low %v1095, %v1096
        %v1109 = vunpack.c.l.s4 1983009808
        %v1110 = vunpack.c.0.s8 %v1109
        %v1111 = vlaneseq
        %v1112 = vshrl.u32 %v1111, 7
        %v1113 = vsub.s32 %v1110, %v1112
        %v1114 = vrot.slane %v1107, %v1113
        %v1115 = vcombine.low %v1087, %v1094
        %v1117 = vunpack.c.l.s4 1983009808
        %v1118 = vunpack.c.0.s8 %v1117
        %v1119 = vlaneseq
        %v1120 = vshrl.u32 %v1119, 7
        %v1121 = vsub.s32 %v1118, %v1120
        %v1122 = vrot.slane %v1115, %v1121
        %v1123 = vcombine.low %v1097, %v1098
        %v1125 = vunpack.c.l.s4 1983009808
        %v1126 = vunpack.c.0.s8 %v1125
        %v1127 = vlaneseq
        %v1128 = vshrl.u32 %v1127, 7
        %v1129 = vsub.s32 %v1126, %v1128
        %v1130 = vrot.slane %v1123, %v1129
        %v1131 = vcombine.low %v1106, %v1114
        %v1132 = vcombine.high %v1106, %v1114
        %v1134 = vunpack.c.l.s4 1934713408
        %v1135 = vunpack.c.0.s8 %v1134
        %v1136 = vlaneseq
        %v1137 = vshrl.u32 %v1136, 7
        %v1138 = vsub.s32 %v1135, %v1137
        %v1139 = vrot.slane %v1131, %v1138
        %v1141 = vunpack.c.l.s4 1934713408
        %v1142 = vunpack.c.0.s8 %v1141
        %v1143 = vlaneseq
        %v1144 = vshrl.u32 %v1143, 7
        %v1145 = vsub.s32 %v1142, %v1144
        %v1146 = vrot.slane %v1132, %v1145
        %v1147 = vcombine.low %v1122, %v1130
        %v1148 = vcombine.high %v1122, %v1130
        %v1150 = vunpack.c.l.s4 1934713408
        %v1151 = vunpack.c.0.s8 %v1150
        %v1152 = vlaneseq
        %v1153 = vshrl.u32 %v1152, 7
        %v1154 = vsub.s32 %v1151, %v1153
        %v1155 = vrot.slane %v1147, %v1154
        %v1157 = vunpack.c.l.s4 1934713408
        %v1158 = vunpack.c.0.s8 %v1157
        %v1159 = vlaneseq
        %v1160 = vshrl.u32 %v1159, 7
        %v1161 = vsub.s32 %v1158, %v1160
        %v1162 = vrot.slane %v1148, %v1161
        %v1163 = vcombine.low %v1139, %v1155
        %v1164 = vcombine.high %v1139, %v1155
        %v1165 = vcombine.low %v1146, %v1162
        %v1166 = vcombine.high %v1146, %v1162
        %v1167 = vpack.c.bf16 %v1163, %v1163
        %v1168 = vpack.c.bf16 %v1164, %v1164
        %v1169 = vpack.c.bf16 %v1165, %v1165
        %v1170 = vpack.c.bf16 %v1166, %v1166
        %vm1171 = vcmask 64512
        %v1173 = vsel %vm1171, %v863, 0
        %v1176 = vsel %vm1171, %v1015, 0
        %1178 = vmatprep.subr.bf16.mxu0 0
        %1179 = vmatpush1.bf16.xpose.msra.mxu0 %v1176
        %1180 = vmatprep.subr.bf16.mxu0 0
        %1181 = vmatpush1.bf16.xpose.msra.mxu0 0
        %1182 = vmatprep.subr.bf16.mxu0 0
        %1183 = vmatpush1.bf16.xpose.msra.mxu0 0
        %1184 = vmatprep.subr.bf16.mxu0 0
        %1185 = vmatpush1.bf16.xpose.msra.mxu0 0
        %1186 = vmatprep.subr.bf16.mxu0 0
        %1187 = vmatpush1.bf16.xpose.msra.mxu0 0
        %1188 = vmatprep.subr.bf16.mxu0 0
        %1189 = vmatpush1.bf16.xpose.msra.mxu0 0
        %1190 = vmatprep.subr.bf16.mxu0 0
        %1191 = vmatpush1.bf16.xpose.msra.mxu0 0
        %1192 = vmatprep.subr.bf16.mxu0 0
        %1193 = vmatpush1.bf16.xpose.msra.mxu0 0
        %1194 = vmatprep.subr.bf16.mxu0 0
        %1195 = vmatpush1.bf16.xpose.msra.mxu0 0
        %1196 = vmatprep.subr.bf16.mxu0 0
        %1197 = vmatpush1.bf16.xpose.msra.mxu0 0
        %1198 = vmatprep.subr.bf16.mxu0 0
        %1199 = vmatpush1.bf16.xpose.msra.mxu0 0
        %1200 = vmatprep.subr.bf16.mxu0 0
        %1201 = vmatpush1.bf16.xpose.msra.mxu0 0
        %1202 = vmatprep.subr.bf16.mxu0 0
        %1203 = vmatpush1.bf16.xpose.msra.mxu0 0
        %1204 = vmatprep.subr.bf16.mxu0 0
        %1205 = vmatpush1.bf16.xpose.msra.mxu0 0
        %1206 = vmatprep.subr.bf16.mxu0 0
        %1207 = vmatpush1.bf16.xpose.msra.mxu0 0
        %1208 = vmatprep.subr.bf16.mxu0 0
        %1209 = vmatpush1.bf16.xpose.msra.mxu0 0
        %1210 = vmatprep.mubr.bf16.mxu0 0
        %1211 = vmatmul.mubr.bf16.gmra.mrb[0].mxu0 %v1173
        %v1212 = vpop.f32.mrb[0].mxu0
        %v1213 = vadd.f32 0.0, %v1212
        %v1214 = vpop.f32.mrb[0].mxu0
        %v1215 = vpop.f32.mrb[0].mxu0
        %v1216 = vpop.f32.mrb[0].mxu0
        %1217 = vdwg.mxu0
        %v1219 = vsel %vm1171, %v864, 0
        %v1222 = vsel %vm1171, %v1016, 0
        %1224 = vmatprep.subr.bf16.mxu0 0
        %1225 = vmatpush1.bf16.xpose.msra.mxu0 %v1222
        %1226 = vmatprep.subr.bf16.mxu0 0
        %1227 = vmatpush1.bf16.xpose.msra.mxu0 0
        %1228 = vmatprep.subr.bf16.mxu0 0
        %1229 = vmatpush1.bf16.xpose.msra.mxu0 0
        %1230 = vmatprep.subr.bf16.mxu0 0
        %1231 = vmatpush1.bf16.xpose.msra.mxu0 0
        %1232 = vmatprep.subr.bf16.mxu0 0
        %1233 = vmatpush1.bf16.xpose.msra.mxu0 0
        %1234 = vmatprep.subr.bf16.mxu0 0
        %1235 = vmatpush1.bf16.xpose.msra.mxu0 0
        %1236 = vmatprep.subr.bf16.mxu0 0
        %1237 = vmatpush1.bf16.xpose.msra.mxu0 0
        %1238 = vmatprep.subr.bf16.mxu0 0
        %1239 = vmatpush1.bf16.xpose.msra.mxu0 0
        %1240 = vmatprep.subr.bf16.mxu0 0
        %1241 = vmatpush1.bf16.xpose.msra.mxu0 0
        %1242 = vmatprep.subr.bf16.mxu0 0
        %1243 = vmatpush1.bf16.xpose.msra.mxu0 0
        %1244 = vmatprep.subr.bf16.mxu0 0
        %1245 = vmatpush1.bf16.xpose.msra.mxu0 0
        %1246 = vmatprep.subr.bf16.mxu0 0
        %1247 = vmatpush1.bf16.xpose.msra.mxu0 0
        %1248 = vmatprep.subr.bf16.mxu0 0
        %1249 = vmatpush1.bf16.xpose.msra.mxu0 0
        %1250 = vmatprep.subr.bf16.mxu0 0
        %1251 = vmatpush1.bf16.xpose.msra.mxu0 0
        %1252 = vmatprep.subr.bf16.mxu0 0
        %1253 = vmatpush1.bf16.xpose.msra.mxu0 0
        %1254 = vmatprep.subr.bf16.mxu0 0
        %1255 = vmatpush1.bf16.xpose.msra.mxu0 0
        %1256 = vmatprep.mubr.bf16.mxu0 0
        %1257 = vmatmul.mubr.bf16.gmra.mrb[0].mxu0 %v1219
        %v1258 = vpop.f32.mrb[0].mxu0
        %v1259 = vadd.f32 0.0, %v1258
        %v1260 = vpop.f32.mrb[0].mxu0
        %v1261 = vpop.f32.mrb[0].mxu0
        %v1262 = vpop.f32.mrb[0].mxu0
        %1263 = vdwg.mxu0
        %v1265 = vsel %vm1171, %v865, 0
        %v1268 = vsel %vm1171, %v1017, 0
        %1270 = vmatprep.subr.bf16.mxu0 0
        %1271 = vmatpush1.bf16.xpose.msra.mxu0 %v1268
        %1272 = vmatprep.subr.bf16.mxu0 0
        %1273 = vmatpush1.bf16.xpose.msra.mxu0 0
        %1274 = vmatprep.subr.bf16.mxu0 0
        %1275 = vmatpush1.bf16.xpose.msra.mxu0 0
        %1276 = vmatprep.subr.bf16.mxu0 0
        %1277 = vmatpush1.bf16.xpose.msra.mxu0 0
        %1278 = vmatprep.subr.bf16.mxu0 0
        %1279 = vmatpush1.bf16.xpose.msra.mxu0 0
        %1280 = vmatprep.subr.bf16.mxu0 0
        %1281 = vmatpush1.bf16.xpose.msra.mxu0 0
        %1282 = vmatprep.subr.bf16.mxu0 0
        %1283 = vmatpush1.bf16.xpose.msra.mxu0 0
        %1284 = vmatprep.subr.bf16.mxu0 0
        %1285 = vmatpush1.bf16.xpose.msra.mxu0 0
        %1286 = vmatprep.subr.bf16.mxu0 0
        %1287 = vmatpush1.bf16.xpose.msra.mxu0 0
        %1288 = vmatprep.subr.bf16.mxu0 0
        %1289 = vmatpush1.bf16.xpose.msra.mxu0 0
        %1290 = vmatprep.subr.bf16.mxu0 0
        %1291 = vmatpush1.bf16.xpose.msra.mxu0 0
        %1292 = vmatprep.subr.bf16.mxu0 0
        %1293 = vmatpush1.bf16.xpose.msra.mxu0 0
        %1294 = vmatprep.subr.bf16.mxu0 0
        %1295 = vmatpush1.bf16.xpose.msra.mxu0 0
        %1296 = vmatprep.subr.bf16.mxu0 0
        %1297 = vmatpush1.bf16.xpose.msra.mxu0 0
        %1298 = vmatprep.subr.bf16.mxu0 0
        %1299 = vmatpush1.bf16.xpose.msra.mxu0 0
        %1300 = vmatprep.subr.bf16.mxu0 0
        %1301 = vmatpush1.bf16.xpose.msra.mxu0 0
        %1302 = vmatprep.mubr.bf16.mxu0 0
        %1303 = vmatmul.mubr.bf16.gmra.mrb[0].mxu0 %v1265
        %v1304 = vpop.f32.mrb[0].mxu0
        %v1305 = vadd.f32 0.0, %v1304
        %v1306 = vpop.f32.mrb[0].mxu0
        %v1307 = vpop.f32.mrb[0].mxu0
        %v1308 = vpop.f32.mrb[0].mxu0
        %1309 = vdwg.mxu0
        %v1311 = vsel %vm1171, %v866, 0
        %v1314 = vsel %vm1171, %v1018, 0
        %1316 = vmatprep.subr.bf16.mxu0 0
        %1317 = vmatpush1.bf16.xpose.msra.mxu0 %v1314
        %1318 = vmatprep.subr.bf16.mxu0 0
        %1319 = vmatpush1.bf16.xpose.msra.mxu0 0
        %1320 = vmatprep.subr.bf16.mxu0 0
        %1321 = vmatpush1.bf16.xpose.msra.mxu0 0
        %1322 = vmatprep.subr.bf16.mxu0 0
        %1323 = vmatpush1.bf16.xpose.msra.mxu0 0
        %1324 = vmatprep.subr.bf16.mxu0 0
        %1325 = vmatpush1.bf16.xpose.msra.mxu0 0
        %1326 = vmatprep.subr.bf16.mxu0 0
        %1327 = vmatpush1.bf16.xpose.msra.mxu0 0
        %1328 = vmatprep.subr.bf16.mxu0 0
        %1329 = vmatpush1.bf16.xpose.msra.mxu0 0
        %1330 = vmatprep.subr.bf16.mxu0 0
        %1331 = vmatpush1.bf16.xpose.msra.mxu0 0
        %1332 = vmatprep.subr.bf16.mxu0 0
        %1333 = vmatpush1.bf16.xpose.msra.mxu0 0
        %1334 = vmatprep.subr.bf16.mxu0 0
        %1335 = vmatpush1.bf16.xpose.msra.mxu0 0
        %1336 = vmatprep.subr.bf16.mxu0 0
        %1337 = vmatpush1.bf16.xpose.msra.mxu0 0
        %1338 = vmatprep.subr.bf16.mxu0 0
        %1339 = vmatpush1.bf16.xpose.msra.mxu0 0
        %1340 = vmatprep.subr.bf16.mxu0 0
        %1341 = vmatpush1.bf16.xpose.msra.mxu0 0
        %1342 = vmatprep.subr.bf16.mxu0 0
        %1343 = vmatpush1.bf16.xpose.msra.mxu0 0
        %1344 = vmatprep.subr.bf16.mxu0 0
        %1345 = vmatpush1.bf16.xpose.msra.mxu0 0
        %1346 = vmatprep.subr.bf16.mxu0 0
        %1347 = vmatpush1.bf16.xpose.msra.mxu0 0
        %1348 = vmatprep.mubr.bf16.mxu0 0
        %1349 = vmatmul.mubr.bf16.gmra.mrb[0].mxu0 %v1311
        %v1350 = vpop.f32.mrb[0].mxu0
        %v1351 = vadd.f32 0.0, %v1350
        %v1352 = vpop.f32.mrb[0].mxu0
        %v1353 = vpop.f32.mrb[0].mxu0
        %v1354 = vpop.f32.mrb[0].mxu0
        %1355 = vdwg.mxu0
        %v1356 = vsel %vm1171, %v1213, -inf
        %1357 = vmax.xlane.f32.xlu0 %v1356
        %v1358 = vpop.xlane.xlu0 %1357
        %v1359 = vsel %vm1171, %v1259, -inf
        %1360 = vmax.xlane.f32.xlu0 %v1359
        %v1361 = vpop.xlane.xlu0 %1360
        %v1362 = vsel %vm1171, %v1305, -inf
        %1363 = vmax.xlane.f32.xlu0 %v1362
        %v1364 = vpop.xlane.xlu0 %1363
        %v1365 = vsel %vm1171, %v1351, -inf
        %1366 = vmax.xlane.f32.xlu0 %v1365
        %v1367 = vpop.xlane.xlu0 %1366
        %v1368 = vsub.f32 %v1213, %v1358
        %v1369 = vsub.f32 %v1259, %v1361
        %v1370 = vsub.f32 %v1305, %v1364
        %v1371 = vsub.f32 %v1351, %v1367
        %v1372 = vmul.f32 %v1368, 1.442695
        %v1373 = vpow.pop %v1372
        %v1374 = vmul.f32 %v1369, 1.442695
        %v1375 = vpow.pop %v1374
        %v1376 = vmul.f32 %v1370, 1.442695
        %v1377 = vpow.pop %v1376
        %v1378 = vmul.f32 %v1371, 1.442695
        %v1379 = vpow.pop %v1378
        %v1380 = vsel %vm1171, %v1373, 0.0
        %1381 = vadd.xlane.f32.xlu0 %v1380
        %v1382 = vpop.xlane.xlu0 %1381
        %v1383 = vsel %vm1171, %v1375, 0.0
        %1384 = vadd.xlane.f32.xlu0 %v1383
        %v1385 = vpop.xlane.xlu0 %1384
        %v1386 = vsel %vm1171, %v1377, 0.0
        %1387 = vadd.xlane.f32.xlu0 %v1386
        %v1388 = vpop.xlane.xlu0 %1387
        %v1389 = vsel %vm1171, %v1379, 0.0
        %1390 = vadd.xlane.f32.xlu0 %v1389
        %v1391 = vpop.xlane.xlu0 %1390
        %v1392 = vrcp.pop %v1382
        %v1393 = vrcp.pop %v1385
        %v1394 = vrcp.pop %v1388
        %v1395 = vrcp.pop %v1391
        %v1396 = vmul.f32 %v1373, %v1392
        %v1397 = vmul.f32 %v1375, %v1393
        %v1398 = vmul.f32 %v1377, %v1394
        %v1399 = vmul.f32 %v1379, %v1395
        %v1400 = vpack.c.bf16 %v1396, %v1396
        %v1401 = vpack.c.bf16 %v1397, %v1397
        %v1402 = vpack.c.bf16 %v1398, %v1398
        %v1403 = vpack.c.bf16 %v1399, %v1399
        %v1405 = vsel %vm1171, %v1400, 0
        %vm1407 = vcmask 1043456
        %v1409 = vsel %vm1407, %v1167, 0
        %1411 = vmatprep.subr.bf16.mxu0 0
        %1412 = vmatpush1.bf16.msra.mxu0 %v1409
        %1413 = vmatprep.subr.bf16.mxu0 0
        %1414 = vmatpush1.bf16.msra.mxu0 0
        %1415 = vmatprep.subr.bf16.mxu0 0
        %1416 = vmatpush1.bf16.msra.mxu0 0
        %1417 = vmatprep.subr.bf16.mxu0 0
        %1418 = vmatpush1.bf16.msra.mxu0 0
        %1419 = vmatprep.subr.bf16.mxu0 0
        %1420 = vmatpush1.bf16.msra.mxu0 0
        %1421 = vmatprep.subr.bf16.mxu0 0
        %1422 = vmatpush1.bf16.msra.mxu0 0
        %1423 = vmatprep.subr.bf16.mxu0 0
        %1424 = vmatpush1.bf16.msra.mxu0 0
        %1425 = vmatprep.subr.bf16.mxu0 0
        %1426 = vmatpush1.bf16.msra.mxu0 0
        %1427 = vmatprep.subr.bf16.mxu0 0
        %1428 = vmatpush1.bf16.msra.mxu0 0
        %1429 = vmatprep.subr.bf16.mxu0 0
        %1430 = vmatpush1.bf16.msra.mxu0 0
        %1431 = vmatprep.subr.bf16.mxu0 0
        %1432 = vmatpush1.bf16.msra.mxu0 0
        %1433 = vmatprep.subr.bf16.mxu0 0
        %1434 = vmatpush1.bf16.msra.mxu0 0
        %1435 = vmatprep.subr.bf16.mxu0 0
        %1436 = vmatpush1.bf16.msra.mxu0 0
        %1437 = vmatprep.subr.bf16.mxu0 0
        %1438 = vmatpush1.bf16.msra.mxu0 0
        %1439 = vmatprep.subr.bf16.mxu0 0
        %1440 = vmatpush1.bf16.msra.mxu0 0
        %1441 = vmatprep.subr.bf16.mxu0 0
        %1442 = vmatpush1.bf16.msra.mxu0 0
        %1443 = vmatprep.mubr.bf16.mxu0 0
        %1444 = vmatmul.mubr.bf16.gmra.mrb[0].mxu0 %v1405
        %v1445 = vpop.f32.mrb[0].mxu0
        %v1446 = vadd.f32 0.0, %v1445
        %v1447 = vpop.f32.mrb[0].mxu0
        %v1448 = vpop.f32.mrb[0].mxu0
        %v1449 = vpop.f32.mrb[0].mxu0
        %1450 = vdwg.mxu0
        %v1452 = vsel %vm1171, %v1401, 0
        %v1455 = vsel %vm1407, %v1168, 0
        %1457 = vmatprep.subr.bf16.mxu0 0
        %1458 = vmatpush1.bf16.msra.mxu0 %v1455
        %1459 = vmatprep.subr.bf16.mxu0 0
        %1460 = vmatpush1.bf16.msra.mxu0 0
        %1461 = vmatprep.subr.bf16.mxu0 0
        %1462 = vmatpush1.bf16.msra.mxu0 0
        %1463 = vmatprep.subr.bf16.mxu0 0
        %1464 = vmatpush1.bf16.msra.mxu0 0
        %1465 = vmatprep.subr.bf16.mxu0 0
        %1466 = vmatpush1.bf16.msra.mxu0 0
        %1467 = vmatprep.subr.bf16.mxu0 0
        %1468 = vmatpush1.bf16.msra.mxu0 0
        %1469 = vmatprep.subr.bf16.mxu0 0
        %1470 = vmatpush1.bf16.msra.mxu0 0
        %1471 = vmatprep.subr.bf16.mxu0 0
        %1472 = vmatpush1.bf16.msra.mxu0 0
        %1473 = vmatprep.subr.bf16.mxu0 0
        %1474 = vmatpush1.bf16.msra.mxu0 0
        %1475 = vmatprep.subr.bf16.mxu0 0
        %1476 = vmatpush1.bf16.msra.mxu0 0
        %1477 = vmatprep.subr.bf16.mxu0 0
        %1478 = vmatpush1.bf16.msra.mxu0 0
        %1479 = vmatprep.subr.bf16.mxu0 0
        %1480 = vmatpush1.bf16.msra.mxu0 0
        %1481 = vmatprep.subr.bf16.mxu0 0
        %1482 = vmatpush1.bf16.msra.mxu0 0
        %1483 = vmatprep.subr.bf16.mxu0 0
        %1484 = vmatpush1.bf16.msra.mxu0 0
        %1485 = vmatprep.subr.bf16.mxu0 0
        %1486 = vmatpush1.bf16.msra.mxu0 0
        %1487 = vmatprep.subr.bf16.mxu0 0
        %1488 = vmatpush1.bf16.msra.mxu0 0
        %1489 = vmatprep.mubr.bf16.mxu0 0
        %1490 = vmatmul.mubr.bf16.gmra.mrb[0].mxu0 %v1452
        %v1491 = vpop.f32.mrb[0].mxu0
        %v1492 = vadd.f32 0.0, %v1491
        %v1493 = vpop.f32.mrb[0].mxu0
        %v1494 = vpop.f32.mrb[0].mxu0
        %v1495 = vpop.f32.mrb[0].mxu0
        %1496 = vdwg.mxu0
        %v1498 = vsel %vm1171, %v1402, 0
        %v1501 = vsel %vm1407, %v1169, 0
        %1503 = vmatprep.subr.bf16.mxu0 0
        %1504 = vmatpush1.bf16.msra.mxu0 %v1501
        %1505 = vmatprep.subr.bf16.mxu0 0
        %1506 = vmatpush1.bf16.msra.mxu0 0
        %1507 = vmatprep.subr.bf16.mxu0 0
        %1508 = vmatpush1.bf16.msra.mxu0 0
        %1509 = vmatprep.subr.bf16.mxu0 0
        %1510 = vmatpush1.bf16.msra.mxu0 0
        %1511 = vmatprep.subr.bf16.mxu0 0
        %1512 = vmatpush1.bf16.msra.mxu0 0
        %1513 = vmatprep.subr.bf16.mxu0 0
        %1514 = vmatpush1.bf16.msra.mxu0 0
        %1515 = vmatprep.subr.bf16.mxu0 0
        %1516 = vmatpush1.bf16.msra.mxu0 0
        %1517 = vmatprep.subr.bf16.mxu0 0
        %1518 = vmatpush1.bf16.msra.mxu0 0
        %1519 = vmatprep.subr.bf16.mxu0 0
        %1520 = vmatpush1.bf16.msra.mxu0 0
        %1521 = vmatprep.subr.bf16.mxu0 0
        %1522 = vmatpush1.bf16.msra.mxu0 0
        %1523 = vmatprep.subr.bf16.mxu0 0
        %1524 = vmatpush1.bf16.msra.mxu0 0
        %1525 = vmatprep.subr.bf16.mxu0 0
        %1526 = vmatpush1.bf16.msra.mxu0 0
        %1527 = vmatprep.subr.bf16.mxu0 0
        %1528 = vmatpush1.bf16.msra.mxu0 0
        %1529 = vmatprep.subr.bf16.mxu0 0
        %1530 = vmatpush1.bf16.msra.mxu0 0
        %1531 = vmatprep.subr.bf16.mxu0 0
        %1532 = vmatpush1.bf16.msra.mxu0 0
        %1533 = vmatprep.subr.bf16.mxu0 0
        %1534 = vmatpush1.bf16.msra.mxu0 0
        %1535 = vmatprep.mubr.bf16.mxu0 0
        %1536 = vmatmul.mubr.bf16.gmra.mrb[0].mxu0 %v1498
        %v1537 = vpop.f32.mrb[0].mxu0
        %v1538 = vadd.f32 0.0, %v1537
        %v1539 = vpop.f32.mrb[0].mxu0
        %v1540 = vpop.f32.mrb[0].mxu0
        %v1541 = vpop.f32.mrb[0].mxu0
        %1542 = vdwg.mxu0
        %v1544 = vsel %vm1171, %v1403, 0
        %v1547 = vsel %vm1407, %v1170, 0
        %1549 = vmatprep.subr.bf16.mxu0 0
        %1550 = vmatpush1.bf16.msra.mxu0 %v1547
        %1551 = vmatprep.subr.bf16.mxu0 0
        %1552 = vmatpush1.bf16.msra.mxu0 0
        %1553 = vmatprep.subr.bf16.mxu0 0
        %1554 = vmatpush1.bf16.msra.mxu0 0
        %1555 = vmatprep.subr.bf16.mxu0 0
        %1556 = vmatpush1.bf16.msra.mxu0 0
        %1557 = vmatprep.subr.bf16.mxu0 0
        %1558 = vmatpush1.bf16.msra.mxu0 0
        %1559 = vmatprep.subr.bf16.mxu0 0
        %1560 = vmatpush1.bf16.msra.mxu0 0
        %1561 = vmatprep.subr.bf16.mxu0 0
        %1562 = vmatpush1.bf16.msra.mxu0 0
        %1563 = vmatprep.subr.bf16.mxu0 0
        %1564 = vmatpush1.bf16.msra.mxu0 0
        %1565 = vmatprep.subr.bf16.mxu0 0
        %1566 = vmatpush1.bf16.msra.mxu0 0
        %1567 = vmatprep.subr.bf16.mxu0 0
        %1568 = vmatpush1.bf16.msra.mxu0 0
        %1569 = vmatprep.subr.bf16.mxu0 0
        %1570 = vmatpush1.bf16.msra.mxu0 0
        %1571 = vmatprep.subr.bf16.mxu0 0
        %1572 = vmatpush1.bf16.msra.mxu0 0
        %1573 = vmatprep.subr.bf16.mxu0 0
        %1574 = vmatpush1.bf16.msra.mxu0 0
        %1575 = vmatprep.subr.bf16.mxu0 0
        %1576 = vmatpush1.bf16.msra.mxu0 0
        %1577 = vmatprep.subr.bf16.mxu0 0
        %1578 = vmatpush1.bf16.msra.mxu0 0
        %1579 = vmatprep.subr.bf16.mxu0 0
        %1580 = vmatpush1.bf16.msra.mxu0 0
        %1581 = vmatprep.mubr.bf16.mxu0 0
        %1582 = vmatmul.mubr.bf16.gmra.mrb[0].mxu0 %v1544
        %v1583 = vpop.f32.mrb[0].mxu0
        %v1584 = vadd.f32 0.0, %v1583
        %v1585 = vpop.f32.mrb[0].mxu0
        %v1586 = vpop.f32.mrb[0].mxu0
        %v1587 = vpop.f32.mrb[0].mxu0
        %1588 = vdwg.mxu0
        %v1589 = vpack.c.bf16 %v1446, %v1446
        %v1590 = vpack.c.bf16 %v1492, %v1492
        %v1591 = vpack.c.bf16 %v1538, %v1538
        %v1592 = vpack.c.bf16 %v1584, %v1584
        %v1593 = vld [vmem:[%s608] sm:$0xf]
        %v1594 = vld [vmem:[%s608 + $0x4] sm:$0xf]
        %v1595 = vld [vmem:[%s608 + $0x8] sm:$0xf]
        %v1596 = vld [vmem:[%s608 + $0xc] sm:$0xf]
        %v1598 = vsel %vm1171, %v1589, 0
        %v1601 = vsel %vm1407, %v1593, 0
        %1603 = vmatprep.subr.bf16.mxu0 0
        %1604 = vmatpush1.bf16.msra.mxu0 %v1601
        %1605 = vmatprep.subr.bf16.mxu0 0
        %1606 = vmatpush1.bf16.msra.mxu0 0
        %1607 = vmatprep.subr.bf16.mxu0 0
        %1608 = vmatpush1.bf16.msra.mxu0 0
        %1609 = vmatprep.subr.bf16.mxu0 0
        %1610 = vmatpush1.bf16.msra.mxu0 0
        %1611 = vmatprep.subr.bf16.mxu0 0
        %1612 = vmatpush1.bf16.msra.mxu0 0
        %1613 = vmatprep.subr.bf16.mxu0 0
        %1614 = vmatpush1.bf16.msra.mxu0 0
        %1615 = vmatprep.subr.bf16.mxu0 0
        %1616 = vmatpush1.bf16.msra.mxu0 0
        %1617 = vmatprep.subr.bf16.mxu0 0
        %1618 = vmatpush1.bf16.msra.mxu0 0
        %1619 = vmatprep.subr.bf16.mxu0 0
        %1620 = vmatpush1.bf16.msra.mxu0 0
        %1621 = vmatprep.subr.bf16.mxu0 0
        %1622 = vmatpush1.bf16.msra.mxu0 0
        %1623 = vmatprep.subr.bf16.mxu0 0
        %1624 = vmatpush1.bf16.msra.mxu0 0
        %1625 = vmatprep.subr.bf16.mxu0 0
        %1626 = vmatpush1.bf16.msra.mxu0 0
        %1627 = vmatprep.subr.bf16.mxu0 0
        %1628 = vmatpush1.bf16.msra.mxu0 0
        %1629 = vmatprep.subr.bf16.mxu0 0
        %1630 = vmatpush1.bf16.msra.mxu0 0
        %1631 = vmatprep.subr.bf16.mxu0 0
        %1632 = vmatpush1.bf16.msra.mxu0 0
        %1633 = vmatprep.subr.bf16.mxu0 0
        %1634 = vmatpush1.bf16.msra.mxu0 0
        %1635 = vmatprep.mubr.bf16.mxu0 0
        %1636 = vmatmul.mubr.bf16.gmra.mrb[0].mxu0 %v1598
        %v1637 = vpop.f32.mrb[0].mxu0
        %v1638 = vadd.f32 0.0, %v1637
        %v1639 = vpop.f32.mrb[0].mxu0
        %v1640 = vpop.f32.mrb[0].mxu0
        %v1641 = vpop.f32.mrb[0].mxu0
        %1642 = vdwg.mxu0
        %v1644 = vsel %vm1171, %v1590, 0
        %v1647 = vsel %vm1407, %v1594, 0
        %1649 = vmatprep.subr.bf16.mxu0 0
        %1650 = vmatpush1.bf16.msra.mxu0 %v1647
        %1651 = vmatprep.subr.bf16.mxu0 0
        %1652 = vmatpush1.bf16.msra.mxu0 0
        %1653 = vmatprep.subr.bf16.mxu0 0
        %1654 = vmatpush1.bf16.msra.mxu0 0
        %1655 = vmatprep.subr.bf16.mxu0 0
        %1656 = vmatpush1.bf16.msra.mxu0 0
        %1657 = vmatprep.subr.bf16.mxu0 0
        %1658 = vmatpush1.bf16.msra.mxu0 0
        %1659 = vmatprep.subr.bf16.mxu0 0
        %1660 = vmatpush1.bf16.msra.mxu0 0
        %1661 = vmatprep.subr.bf16.mxu0 0
        %1662 = vmatpush1.bf16.msra.mxu0 0
        %1663 = vmatprep.subr.bf16.mxu0 0
        %1664 = vmatpush1.bf16.msra.mxu0 0
        %1665 = vmatprep.subr.bf16.mxu0 0
        %1666 = vmatpush1.bf16.msra.mxu0 0
        %1667 = vmatprep.subr.bf16.mxu0 0
        %1668 = vmatpush1.bf16.msra.mxu0 0
        %1669 = vmatprep.subr.bf16.mxu0 0
        %1670 = vmatpush1.bf16.msra.mxu0 0
        %1671 = vmatprep.subr.bf16.mxu0 0
        %1672 = vmatpush1.bf16.msra.mxu0 0
        %1673 = vmatprep.subr.bf16.mxu0 0
        %1674 = vmatpush1.bf16.msra.mxu0 0
        %1675 = vmatprep.subr.bf16.mxu0 0
        %1676 = vmatpush1.bf16.msra.mxu0 0
        %1677 = vmatprep.subr.bf16.mxu0 0
        %1678 = vmatpush1.bf16.msra.mxu0 0
        %1679 = vmatprep.subr.bf16.mxu0 0
        %1680 = vmatpush1.bf16.msra.mxu0 0
        %1681 = vmatprep.mubr.bf16.mxu0 0
        %1682 = vmatmul.mubr.bf16.gmra.mrb[0].mxu0 %v1644
        %v1683 = vpop.f32.mrb[0].mxu0
        %v1684 = vadd.f32 0.0, %v1683
        %v1685 = vpop.f32.mrb[0].mxu0
        %v1686 = vpop.f32.mrb[0].mxu0
        %v1687 = vpop.f32.mrb[0].mxu0
        %1688 = vdwg.mxu0
        %v1690 = vsel %vm1171, %v1591, 0
        %v1693 = vsel %vm1407, %v1595, 0
        %1695 = vmatprep.subr.bf16.mxu0 0
        %1696 = vmatpush1.bf16.msra.mxu0 %v1693
        %1697 = vmatprep.subr.bf16.mxu0 0
        %1698 = vmatpush1.bf16.msra.mxu0 0
        %1699 = vmatprep.subr.bf16.mxu0 0
        %1700 = vmatpush1.bf16.msra.mxu0 0
        %1701 = vmatprep.subr.bf16.mxu0 0
        %1702 = vmatpush1.bf16.msra.mxu0 0
        %1703 = vmatprep.subr.bf16.mxu0 0
        %1704 = vmatpush1.bf16.msra.mxu0 0
        %1705 = vmatprep.subr.bf16.mxu0 0
        %1706 = vmatpush1.bf16.msra.mxu0 0
        %1707 = vmatprep.subr.bf16.mxu0 0
        %1708 = vmatpush1.bf16.msra.mxu0 0
        %1709 = vmatprep.subr.bf16.mxu0 0
        %1710 = vmatpush1.bf16.msra.mxu0 0
        %1711 = vmatprep.subr.bf16.mxu0 0
        %1712 = vmatpush1.bf16.msra.mxu0 0
        %1713 = vmatprep.subr.bf16.mxu0 0
        %1714 = vmatpush1.bf16.msra.mxu0 0
        %1715 = vmatprep.subr.bf16.mxu0 0
        %1716 = vmatpush1.bf16.msra.mxu0 0
        %1717 = vmatprep.subr.bf16.mxu0 0
        %1718 = vmatpush1.bf16.msra.mxu0 0
        %1719 = vmatprep.subr.bf16.mxu0 0
        %1720 = vmatpush1.bf16.msra.mxu0 0
        %1721 = vmatprep.subr.bf16.mxu0 0
        %1722 = vmatpush1.bf16.msra.mxu0 0
        %1723 = vmatprep.subr.bf16.mxu0 0
        %1724 = vmatpush1.bf16.msra.mxu0 0
        %1725 = vmatprep.subr.bf16.mxu0 0
        %1726 = vmatpush1.bf16.msra.mxu0 0
        %1727 = vmatprep.mubr.bf16.mxu0 0
        %1728 = vmatmul.mubr.bf16.gmra.mrb[0].mxu0 %v1690
        %v1729 = vpop.f32.mrb[0].mxu0
        %v1730 = vadd.f32 0.0, %v1729
        %v1731 = vpop.f32.mrb[0].mxu0
        %v1732 = vpop.f32.mrb[0].mxu0
        %v1733 = vpop.f32.mrb[0].mxu0
        %1734 = vdwg.mxu0
        %v1736 = vsel %vm1171, %v1592, 0
        %v1739 = vsel %vm1407, %v1596, 0
        %1741 = vmatprep.subr.bf16.mxu0 0
        %1742 = vmatpush1.bf16.msra.mxu0 %v1739
        %1743 = vmatprep.subr.bf16.mxu0 0
        %1744 = vmatpush1.bf16.msra.mxu0 0
        %1745 = vmatprep.subr.bf16.mxu0 0
        %1746 = vmatpush1.bf16.msra.mxu0 0
        %1747 = vmatprep.subr.bf16.mxu0 0
        %1748 = vmatpush1.bf16.msra.mxu0 0
        %1749 = vmatprep.subr.bf16.mxu0 0
        %1750 = vmatpush1.bf16.msra.mxu0 0
        %1751 = vmatprep.subr.bf16.mxu0 0
        %1752 = vmatpush1.bf16.msra.mxu0 0
        %1753 = vmatprep.subr.bf16.mxu0 0
        %1754 = vmatpush1.bf16.msra.mxu0 0
        %1755 = vmatprep.subr.bf16.mxu0 0
        %1756 = vmatpush1.bf16.msra.mxu0 0
        %1757 = vmatprep.subr.bf16.mxu0 0
        %1758 = vmatpush1.bf16.msra.mxu0 0
        %1759 = vmatprep.subr.bf16.mxu0 0
        %1760 = vmatpush1.bf16.msra.mxu0 0
        %1761 = vmatprep.subr.bf16.mxu0 0
        %1762 = vmatpush1.bf16.msra.mxu0 0
        %1763 = vmatprep.subr.bf16.mxu0 0
        %1764 = vmatpush1.bf16.msra.mxu0 0
        %1765 = vmatprep.subr.bf16.mxu0 0
        %1766 = vmatpush1.bf16.msra.mxu0 0
        %1767 = vmatprep.subr.bf16.mxu0 0
        %1768 = vmatpush1.bf16.msra.mxu0 0
        %1769 = vmatprep.subr.bf16.mxu0 0
        %1770 = vmatpush1.bf16.msra.mxu0 0
        %1771 = vmatprep.subr.bf16.mxu0 0
        %1772 = vmatpush1.bf16.msra.mxu0 0
        %1773 = vmatprep.mubr.bf16.mxu0 0
        %1774 = vmatmul.mubr.bf16.gmra.mrb[0].mxu0 %v1736
        %v1775 = vpop.f32.mrb[0].mxu0
        %v1776 = vadd.f32 0.0, %v1775
        %v1777 = vpop.f32.mrb[0].mxu0
        %v1778 = vpop.f32.mrb[0].mxu0
        %v1779 = vpop.f32.mrb[0].mxu0
        %1780 = vdwg.mxu0
        %v1781 = vsel %vm673, %v1638, 0.0
        %v1782 = vsel %vm673, %v1684, 0.0
        %v1783 = vadd.f32 %v1781, %v1782
        %v1784 = vsel %vm673, %v1730, 0.0
        %v1785 = vadd.f32 %v1783, %v1784
        %v1786 = vsel %vm673, %v1776, 0.0
        %v1787 = vadd.f32 %v1785, %v1786
        %v1788 = vld [vmem:[%s611] sm:$0x1]
        %v1790 = vlaneseq
        %v1791 = vshrl.u32 %v1790, 7
        %v1792 = vsub.s32 0, %v1791
        %v1793 = vrot.slane %v1788, %v1792
        %v1795 = vadd.f32 %v1787, %v1793
        %v1796 = vadd.f32 %v648, %v1795
        %v1797 = vld [vmem:[%s614] sm:$0x1]
        %v1798 = vld [vmem:[%s617] sm:$0x1]
        %v1799 = vsel %vm673, %v1796, 0.0
        %1800 = vadd.xlane.f32.xlu0 %v1799
        %v1801 = vpop.xlane.xlu0 %1800
        %v1802 = vrcp.pop 32.0
        %v1803 = vmul.f32 %v1801, %v1802
        %v1804 = vsub.f32 %v1796, %v1803
        %v1805 = vmul.f32 %v1804, %v1804
        %v1806 = vsel %vm673, %v1805, 0.0
        %1807 = vadd.xlane.f32.xlu0 %v1806
        %v1808 = vpop.xlane.xlu0 %1807
        %v1809 = vmul.f32 %v1808, %v1802
        %v1810 = vadd.f32 %v1809, 1e-12
        %v1811 = vrsqrt.pop %v1810
        %v1812 = vmul.f32 %v1804, %v1811
        %v1814 = vlaneseq
        %v1815 = vshrl.u32 %v1814, 7
        %v1816 = vsub.s32 0, %v1815
        %v1817 = vrot.slane %v1797, %v1816
        %v1819 = vmul.f32 %v1812, %v1817
        %v1821 = vlaneseq
        %v1822 = vshrl.u32 %v1821, 7
        %v1823 = vsub.s32 0, %v1822
        %v1824 = vrot.slane %v1798, %v1823
        %v1826 = vadd.f32 %v1819, %v1824
        %v1827 = vpack.c.bf16 %v1826, %v1826
        %v1828 = vld [vmem:[%s622] sm:$0xf]
        %v1829 = vld [vmem:[%s622 + $0x4] sm:$0xf]
        %v1830 = vld [vmem:[%s622 + $0x8] sm:$0xf]
        %v1831 = vld [vmem:[%s622 + $0xc] sm:$0xf]
        %v1832 = vld [vmem:[%s625] sm:$0x1]
        %v1834 = vlaneseq
        %v1835 = vshrl.u32 %v1834, 7
        %v1836 = vsub.s32 0, %v1835
        %v1837 = vrot.slane %v1832, %v1836
        %v1843 = vunpack.c.l.b16 %v1828
        %v1844 = vunpack.c.l.b16 %v1829
        %v1845 = vunpack.c.l.b16 %v1830
        %v1846 = vunpack.c.l.b16 %v1831
        %v1847 = vpack.c.b16 %v1844, %v1843
        %v1848 = vpack.c.b16 %v1846, %v1845
        %v1852 = vsel %vm673, %v1827, 0
        %1854 = vmatprep.subr.bf16.mxu0 0
        %1855 = vmatpush1.bf16.msra.mxu0 %v1847
        %1856 = vmatprep.subr.bf16.mxu0 0
        %1857 = vmatpush1.bf16.msra.mxu0 %v1848
        %1858 = vmatprep.subr.bf16.mxu0 0
        %1859 = vmatpush1.bf16.msra.mxu0 0
        %1860 = vmatprep.subr.bf16.mxu0 0
        %1861 = vmatpush1.bf16.msra.mxu0 0
        %1862 = vmatprep.subr.bf16.mxu0 0
        %1863 = vmatpush1.bf16.msra.mxu0 0
        %1864 = vmatprep.subr.bf16.mxu0 0
        %1865 = vmatpush1.bf16.msra.mxu0 0
        %1866 = vmatprep.subr.bf16.mxu0 0
        %1867 = vmatpush1.bf16.msra.mxu0 0
        %1868 = vmatprep.subr.bf16.mxu0 0
        %1869 = vmatpush1.bf16.msra.mxu0 0
        %1870 = vmatprep.subr.bf16.mxu0 0
        %1871 = vmatpush1.bf16.msra.mxu0 0
        %1872 = vmatprep.subr.bf16.mxu0 0
        %1873 = vmatpush1.bf16.msra.mxu0 0
        %1874 = vmatprep.subr.bf16.mxu0 0
        %1875 = vmatpush1.bf16.msra.mxu0 0
        %1876 = vmatprep.subr.bf16.mxu0 0
        %1877 = vmatpush1.bf16.msra.mxu0 0
        %1878 = vmatprep.subr.bf16.mxu0 0
        %1879 = vmatpush1.bf16.msra.mxu0 0
        %1880 = vmatprep.subr.bf16.mxu0 0
        %1881 = vmatpush1.bf16.msra.mxu0 0
        %1882 = vmatprep.subr.bf16.mxu0 0
        %1883 = vmatpush1.bf16.msra.mxu0 0
        %1884 = vmatprep.subr.bf16.mxu0 0
        %1885 = vmatpush1.bf16.msra.mxu0 0
        %1886 = vmatprep.mubr.bf16.mxu0 0
        %1887 = vmatmul.mubr.bf16.gmra.mrb[0].mxu0 %v1852
        %v1888 = vpop.f32.mrb[0].mxu0
        %v1889 = vadd.f32 %v1837, %v1888
        %v1890 = vpop.f32.mrb[0].mxu0
        %v1891 = vpop.f32.mrb[0].mxu0
        %v1892 = vpop.f32.mrb[0].mxu0
        %1893 = vdwg.mxu0
        %v1894 = vmul.f32 %v1889, 0.5
        %v1895 = vmul.f32 %v1889, 0.044715
        %v1896 = vmul.f32 %v1895, %v1889
        %v1897 = vmul.f32 %v1896, %v1889
        %v1898 = vadd.f32 %v1889, %v1897
        %v1899 = vmul.f32 %v1898, 0.7978846
        %v1900 = vtanh.pop %v1899
        %v1901 = vadd.f32 %v1900, 1.0
        %v1902 = vmul.f32 %v1894, %v1901
        %v1903 = vpack.c.bf16 %v1902, %v1902
        %v1904 = vld [vmem:[%s630] sm:$0xf]
        %v1905 = vld [vmem:[%s630 + $0x4] sm:$0xf]
        %v1906 = vld [vmem:[%s630 + $0x8] sm:$0xf]
        %v1907 = vld [vmem:[%s630 + $0xc] sm:$0xf]
        %v1908 = vld [vmem:[%s630 + $0x10] sm:$0xf]
        %v1909 = vld [vmem:[%s630 + $0x14] sm:$0xf]
        %v1910 = vld [vmem:[%s630 + $0x18] sm:$0xf]
        %v1911 = vld [vmem:[%s630 + $0x1c] sm:$0xf]
        %v1912 = vld [vmem:[%s630 + $0x20] sm:$0xf]
        %v1913 = vld [vmem:[%s630 + $0x24] sm:$0xf]
        %v1914 = vld [vmem:[%s630 + $0x28] sm:$0xf]
        %v1915 = vld [vmem:[%s630 + $0x2c] sm:$0xf]
        %v1916 = vld [vmem:[%s630 + $0x30] sm:$0xf]
        %v1917 = vld [vmem:[%s630 + $0x34] sm:$0xf]
        %v1918 = vld [vmem:[%s630 + $0x38] sm:$0xf]
        %v1919 = vld [vmem:[%s630 + $0x3c] sm:$0xf]
        %v1920 = vld [vmem:[%s633] sm:$0x1]
        %v1922 = vlaneseq
        %v1923 = vshrl.u32 %v1922, 7
        %v1924 = vsub.s32 0, %v1923
        %v1925 = vrot.slane %v1920, %v1924
        %v1943 = vunpack.c.l.b16 %v1904
        %v1944 = vunpack.c.l.b16 %v1905
        %v1945 = vunpack.c.l.b16 %v1906
        %v1946 = vunpack.c.l.b16 %v1907
        %v1947 = vunpack.c.l.b16 %v1908
        %v1948 = vunpack.c.l.b16 %v1909
        %v1949 = vunpack.c.l.b16 %v1910
        %v1950 = vunpack.c.l.b16 %v1911
        %v1951 = vunpack.c.l.b16 %v1912
        %v1952 = vunpack.c.l.b16 %v1913
        %v1953 = vunpack.c.l.b16 %v1914
        %v1954 = vunpack.c.l.b16 %v1915
        %v1955 = vunpack.c.l.b16 %v1916
        %v1956 = vunpack.c.l.b16 %v1917
        %v1957 = vunpack.c.l.b16 %v1918
        %v1958 = vunpack.c.l.b16 %v1919
        %v1959 = vpack.c.b16 %v1944, %v1943
        %v1960 = vpack.c.b16 %v1946, %v1945
        %v1961 = vpack.c.b16 %v1948, %v1947
        %v1962 = vpack.c.b16 %v1950, %v1949
        %v1963 = vpack.c.b16 %v1952, %v1951
        %v1964 = vpack.c.b16 %v1954, %v1953
        %v1965 = vpack.c.b16 %v1956, %v1955
        %v1966 = vpack.c.b16 %v1958, %v1957
        %1975 = vmatprep.subr.bf16.mxu0 0
        %1976 = vmatpush1.bf16.msra.mxu0 %v1959
        %1977 = vmatprep.subr.bf16.mxu0 0
        %1978 = vmatpush1.bf16.msra.mxu0 %v1960
        %1979 = vmatprep.subr.bf16.mxu0 0
        %1980 = vmatpush1.bf16.msra.mxu0 %v1961
        %1981 = vmatprep.subr.bf16.mxu0 0
        %1982 = vmatpush1.bf16.msra.mxu0 %v1962
        %1983 = vmatprep.subr.bf16.mxu0 0
        %1984 = vmatpush1.bf16.msra.mxu0 %v1963
        %1985 = vmatprep.subr.bf16.mxu0 0
        %1986 = vmatpush1.bf16.msra.mxu0 %v1964
        %1987 = vmatprep.subr.bf16.mxu0 0
        %1988 = vmatpush1.bf16.msra.mxu0 %v1965
        %1989 = vmatprep.subr.bf16.mxu0 0
        %1990 = vmatpush1.bf16.msra.mxu0 %v1966
        %1991 = vmatprep.subr.bf16.mxu0 0
        %1992 = vmatpush1.bf16.msra.mxu0 0
        %1993 = vmatprep.subr.bf16.mxu0 0
        %1994 = vmatpush1.bf16.msra.mxu0 0
        %1995 = vmatprep.subr.bf16.mxu0 0
        %1996 = vmatpush1.bf16.msra.mxu0 0
        %1997 = vmatprep.subr.bf16.mxu0 0
        %1998 = vmatpush1.bf16.msra.mxu0 0
        %1999 = vmatprep.subr.bf16.mxu0 0
        %2000 = vmatpush1.bf16.msra.mxu0 0
        %2001 = vmatprep.subr.bf16.mxu0 0
        %2002 = vmatpush1.bf16.msra.mxu0 0
        %2003 = vmatprep.subr.bf16.mxu0 0
        %2004 = vmatpush1.bf16.msra.mxu0 0
        %2005 = vmatprep.subr.bf16.mxu0 0
        %2006 = vmatpush1.bf16.msra.mxu0 0
        %2007 = vmatprep.mubr.bf16.mxu0 0
        %2008 = vmatmul.mubr.bf16.gmra.mrb[0].mxu0 %v1903
        %v2009 = vpop.f32.mrb[0].mxu0
        %v2010 = vadd.f32 %v1925, %v2009
        %v2011 = vpop.f32.mrb[0].mxu0
        %v2012 = vpop.f32.mrb[0].mxu0
        %v2013 = vpop.f32.mrb[0].mxu0
        %2014 = vdwg.mxu0
        %v2015 = vadd.f32 %v1826, %v2010
        %v2016 = vld [vmem:[%s636] sm:$0x1]
        %v2017 = vld [vmem:[%s639] sm:$0x1]
        %v2018 = vsel %vm673, %v2015, 0.0
        %2019 = vadd.xlane.f32.xlu0 %v2018
        %v2020 = vpop.xlane.xlu0 %2019
        %v2021 = vmul.f32 %v2020, %v1802
        %v2022 = vsub.f32 %v2015, %v2021
        %v2023 = vmul.f32 %v2022, %v2022
        %v2024 = vsel %vm673, %v2023, 0.0
        %2025 = vadd.xlane.f32.xlu0 %v2024
        %v2026 = vpop.xlane.xlu0 %2025
        %v2027 = vmul.f32 %v2026, %v1802
        %v2028 = vadd.f32 %v2027, 1e-12
        %v2029 = vrsqrt.pop %v2028
        %v2030 = vmul.f32 %v2022, %v2029
        %v2032 = vlaneseq
        %v2033 = vshrl.u32 %v2032, 7
        %v2034 = vsub.s32 0, %v2033
        %v2035 = vrot.slane %v2016, %v2034
        %v2037 = vmul.f32 %v2030, %v2035
        %v2039 = vlaneseq
        %v2040 = vshrl.u32 %v2039, 7
        %v2041 = vsub.s32 0, %v2040
        %v2042 = vrot.slane %v2017, %v2041
        %v2044 = vadd.f32 %v2037, %v2042
        %2045 = vst.msk [vmem:[%s591] sm:$0xff] %vm673, %v2044
        %s2046 = sand.u32 %s385, 1
        %s2047 = scalar_lea.sflag [#allocation3], %s2046
        %s2048 = sand.u32 %s385, 1
        %s2049 = smul.addr %s2048, 8
        %s2050 = scalar_lea.vmem [#allocation2], %s2049
        // Predicated region
        $region77: #{tpu_custom_call.1} parent=71 // pred_check
          %p2051 = pneg %p395
        $region78: #{tpu_custom_call.1} parent=71 // pred_check_branch
          %2053 = sbr.rel (%p2051) target = $region80
        $region79: #{tpu_custom_call.1} parent=71 // pred_region
          %s2055 = ssub.s32 128, 128
          %2056 = vsyncadd %s2047, %s2055
          %s2057 = smul.addr %s31, 128
          %s2058 = scalar_lea.hbm %s13, %s2057
          %s2060 = sshll.u32 %s2050, 4
          %s2061 = int_to_ptr.vmem [resolvable:$true] %s2060
          %2063 = dma.vmem_to_hbm [thread:$0]  %s2061, 128, %s2058, %s2047
        $region80: #{tpu_custom_call.1} parent=71 // pred_fallthru
          _
      $region72: #{tpu_custom_call.1} parent=5 // pred_fallthru
        _
      %p2064 = scmp.le.s32.totalorder 2, %s22
      // Predicated region
      $region81: #{tpu_custom_call.1} parent=5 // pred_check
        %p2065 = pneg %p2064
      $region82: #{tpu_custom_call.1} parent=5 // pred_check_branch
        %2067 = sbr.rel (%p2065) target = $region84
      $region83: #{tpu_custom_call.1} parent=5 // pred_region
        %s2068 = ssub.s32 %s22, 2
        // Predicated region
        $region85: #{tpu_custom_call.1} parent=83 // pred_check
          %p2069 = pneg %p401
        $region86: #{tpu_custom_call.1} parent=83 // pred_check_branch
          %2071 = sbr.rel (%p2069) target = $region88
        $region87: #{tpu_custom_call.1} parent=83 // pred_region
          %s2072 = sand.u32 %s386, 1
          %s2073 = scalar_lea.sflag [#allocation3], %s2072
          %s2074 = sand.u32 %s386, 1
          %s2075 = smul.addr %s2074, 8
          %s2076 = scalar_lea.vmem [#allocation2], %s2075
          %2077 = dma.done %s2073, 128
        $region88: #{tpu_custom_call.1} parent=83 // pred_fallthru
          _
      $region84: #{tpu_custom_call.1} parent=5 // pred_fallthru
        _
    $region6: #{tpu_custom_call.1} parent=1 // loop_footer
      %s26 = sadd.s32 1, %s22
    $region7: #{tpu_custom_call.1} parent=1 // loop_footer_branch
      %21 = sbr.rel target = $region3
    $region8: #{tpu_custom_call.1} parent=1 // loop_exit
      _
    %2078 = vsyncpa [#allocation3], 1
    %s2079 = scalar_lea.sflag [#allocation3], 1
    %2080 = vsyncpa %s2079, 1

</llo_original>
